<compile_context>
chip_gen: v7x
topology: tpu7x:2x2x1
jax: 0.10.0
libtpu: 0.0.40
codegen_flags: <defaults>
</compile_context>

<pallas_src>
import functools
import math

import jax
import jax.numpy as jnp
from jax.experimental import pallas as pl
from jax.experimental.pallas import tpu as pltpu


# ----------------------------- Pallas kernel --------------------------------

def _intensity_kernel(
    # inputs (refs)
    x_ref,        # (Bt, T, Din)  matmul dtype (host-cast)
    w_in_ref,     # (Din, D)      matmul dtype
    w_qkv_ref,    # (D, 3D)       matmul dtype, Q columns pre-scaled by 1/sqrt(hd)
    b_qkv_ref,    # (1, 3D)       f32, Q part pre-scaled
    w_sq_ref,     # (4, D, D)     matmul dtype [Wo, W1, W2, W_feat(=Wc@Wf)]
    w_emo_ref,    # (D, 5)        matmul dtype (= Wc@We)
    b_emo_ref,    # (1, 5)        f32 (= bc@We + be)
    vec_ref,      # (9, D)        f32 [b_in, bo, g1, be1, b1, b2, g2, be2, b_feat]
    # outputs (refs)
    feat_ref,     # (Bt, T, D)
    emo_ref,      # (Bt, T, 5)
    *, num_heads, head_dim, mm_dtype,
):
    f32 = jnp.float32
    Bt, T, Din = x_ref.shape
    D = num_heads * head_dim
    R = Bt * T

    vecs = vec_ref[...]                               # (9, D) f32
    b_in, bo = vecs[0:1], vecs[1:2]
    g1, be1 = vecs[2:3], vecs[3:4]
    b1, b2 = vecs[4:5], vecs[5:6]
    g2, be2 = vecs[6:7], vecs[7:8]
    b_feat = vecs[8:9]

    def mm(a, w):
        # weights arrive pre-transposed (in, out) and already in matmul dtype;
        # only the f32 activation gets a (possibly no-op) cast.
        return jnp.dot(a.astype(w.dtype), w, preferred_element_type=f32)

    def layernorm(z, g, b):
        mu = jnp.mean(z, axis=-1, keepdims=True)
        var = jnp.mean((z - mu) ** 2, axis=-1, keepdims=True)
        return (z - mu) * jax.lax.rsqrt(var + 1e-5) * g + b

    # flatten (Bt, T) -> rows so every linear layer sees an (R, C) slab
    x = x_ref[...].reshape(R, Din)                    # already matmul dtype

    # 1. input projection
    h = mm(x, w_in_ref[...]) + b_in                                   # (R, D) f32

    # 2a. multi-head self-attention (fused QKV; Q scale folded on host)
    qkv = mm(h, w_qkv_ref[...]) + b_qkv_ref[...]                      # (R, 3D) f32
    q = qkv[:, 0 * D:1 * D].reshape(Bt, T, D).astype(mm_dtype)
    k = qkv[:, 1 * D:2 * D].reshape(Bt, T, D).astype(mm_dtype)
    v = qkv[:, 2 * D:3 * D].reshape(Bt, T, D).astype(mm_dtype)

    o_heads = []
    for hh in range(num_heads):                                       # static
        sl = slice(hh * head_dim, (hh + 1) * head_dim)
        s = jnp.einsum("bqd,bkd->bqk", q[:, :, sl], k[:, :, sl],
                       preferred_element_type=f32)                    # (Bt,T,T)
        s = s - jnp.max(s, axis=-1, keepdims=True)
        p = jnp.exp(s)
        # approx reciprocal (EUP slot): rows sum to 1 only to ~1e-4 rel error.
        p = p * pl.reciprocal(jnp.sum(p, axis=-1, keepdims=True), approx=True)
        o_heads.append(jnp.einsum("bqk,bkd->bqd", p.astype(mm_dtype),
                                  v[:, :, sl], preferred_element_type=f32))
    o = jnp.concatenate(o_heads, axis=-1).reshape(R, D)               # (R, D) f32

    attn = mm(o, w_sq_ref[0]) + bo               # ONE output projection, K = D
    x1 = layernorm(h + attn, g1, be1)

    # 2b. feed-forward (dim_feedforward == fft_dim), ReLU, post-norm
    ff = jnp.maximum(mm(x1, w_sq_ref[1]) + b1, 0.0)
    ff = mm(ff, w_sq_ref[2]) + b2
    x2 = layernorm(x1 + ff, g2, be2)

    # 3+4. Conv1d(k=1) folded into the two heads; two lane-dense stores.
    x2m = x2.astype(mm_dtype)
    feat = jnp.dot(x2m, w_sq_ref[3], preferred_element_type=f32) + b_feat
    emo = jnp.dot(x2m, w_emo_ref[...], preferred_element_type=f32) + b_emo_ref[...]
    feat_ref[...] = feat.reshape(Bt, T, D).astype(feat_ref.dtype)
    emo_ref[...] = emo.reshape(Bt, T, 5).astype(emo_ref.dtype)


# ----------------------------- host-side packing ------------------------------

def pack_params(params, *, num_heads, matmul_dtype=jnp.bfloat16):
    """PyTorch-layout params ((out, in) weights) -> transposed/fused/stacked,
    matmul weights pre-cast to matmul_dtype (all folds are done in f32 first).

    NOTE: the (9, D) bias/gamma stack relies on dim_feedforward == fft_dim,
    which is what the PyTorch module hard-codes."""
    f32 = jnp.float32
    t = lambda w: jnp.asarray(w, f32).T                # (out,in) -> (in,out)
    a = lambda w: jnp.asarray(w, f32)

    D = params["w_in"].shape[0]
    head_dim = D // num_heads
    scale = 1.0 / math.sqrt(head_dim)

    w_in = t(params["w_in"])                                          # (Din, D)
    # fold the 1/sqrt(head_dim) Q scale into the Q columns / bias
    w_qkv = jnp.concatenate(
        [t(params["wq"]) * scale, t(params["wk"]), t(params["wv"])], axis=1)
    b_qkv = jnp.concatenate(
        [a(params["bq"]) * scale, a(params["bk"]), a(params["bv"])])[None, :]

    # fold the 1x1 conv into the two heads (f32 fold BEFORE any bf16 cast)
    wc, bc = t(params["wc"]), a(params["bc"])
    wf, bf = t(params["wf"]), a(params["bf"])
    we, be = t(params["we"]), a(params["bee"])
    w_feat, b_feat = wc @ wf, bc @ wf + bf                            # (D,D),(D,)
    w_emo, b_emo = wc @ we, (bc @ we + be)[None, :]                   # (D,5),(1,5)

    w_sq = jnp.stack(
        [t(params["wo"]), t(params["w1"]), t(params["w2"]), w_feat], axis=0)

    vec = jnp.stack([a(params["b_in"]), a(params["bo"]),
                     a(params["g1"]), a(params["be1"]),
                     a(params["b1"]), a(params["b2"]),
                     a(params["g2"]), a(params["be2"]), b_feat], axis=0)

    return {"w_in": w_in.astype(matmul_dtype),
            "w_qkv": w_qkv.astype(matmul_dtype),
            "b_qkv": b_qkv,
            "w_sq": w_sq.astype(matmul_dtype),
            "w_emo": w_emo.astype(matmul_dtype),
            "b_emo": b_emo,
            "vec": vec}


# ----------------------------- sizing heuristics ------------------------------

def _tpu_vmem_bytes():
    try:
        return int(pltpu.get_tpu_info().vmem_capacity_bytes)
    except Exception:
        return 64 << 20          # conservative (v7x per-TensorCore VMEM)


def _default_vmem_limit():
    cap = _tpu_vmem_bytes()
    # above the 16/32 MiB scoped defaults, with headroom for compiler scratch
    return min(max(cap * 3 // 4, 32 << 20), 100 << 20)


def _pick_block_batch(B, T, D):
    """Aim for >= 256 rows (Bt*T) per grid step to amortize ~0.35us/step
    overhead and fill the MXU M dim, capped by a per-step VMEM working-set
    budget, and capped so the grid has >= 2 steps (both v7x TCs get work)."""
    budget = _default_vmem_limit() // 3
    target_rows = 256
    bt = 1
    for cand in range(1, B + 1):
        rows = cand * T
        act = rows * (10 * D + 32) * 4        # f32 activation slabs (rough)
        scores = cand * T * T * 4             # one head's score block
        io = 2 * rows * (2 * D + 8) * 4       # double-buffered x + feat/emo blocks
        if act + scores + io > budget:
            break
        bt = cand
        if rows >= target_rows:
            break
    if B >= 2:
        bt = min(bt, -(-B // 2))              # ensure >= 2 grid steps
    return max(bt, 1)


# ----------------------------- wrapper ---------------------------------------

def intensity_extractor_pallas(x, params=None, *, num_heads, packed=None,
                               block_batch=None, matmul_dtype=jnp.bfloat16,
                               vmem_limit_bytes=None):
    """x: (B, T, Din) already concatenated [mel, pitch, energy].
    Pass `packed=pack_params(...)` to reuse packed weights across calls."""
    B, T, Din = x.shape
    out_dtype = x.dtype
    if packed is None:
        packed = pack_params(params, num_heads=num_heads, matmul_dtype=matmul_dtype)
    D = packed["w_in"].shape[1]
    head_dim = D // num_heads

    Bt = block_batch if block_batch is not None else _pick_block_batch(B, T, D)
    Bp = -(-B // Bt) * Bt
    xp = x.astype(matmul_dtype)                 # host-side cast (halves x DMA for bf16)
    if Bp != B:
        # zero padding is benign: padded rows produce finite garbage we discard
        xp = jnp.pad(xp, ((0, Bp - B), (0, 0), (0, 0)))

    def const_spec(shape):
        n = len(shape)
        return pl.BlockSpec(shape, lambda b, _n=n: (0,) * _n)

    order = ["w_in", "w_qkv", "b_qkv", "w_sq", "w_emo", "b_emo", "vec"]
    in_specs = [pl.BlockSpec((Bt, T, Din), lambda b: (b, 0, 0))]
    args = [xp]
    for name in order:
        in_specs.append(const_spec(packed[name].shape))
        args.append(packed[name])

    if vmem_limit_bytes is None:
        vmem_limit_bytes = _default_vmem_limit()

    kernel = functools.partial(_intensity_kernel, num_heads=num_heads,
                               head_dim=head_dim, mm_dtype=matmul_dtype)

    feat, emo = pl.pallas_call(
        kernel,
        out_shape=(jax.ShapeDtypeStruct((Bp, T, D), out_dtype),
                   jax.ShapeDtypeStruct((Bp, T, 5), out_dtype)),
        grid_spec=pltpu.PrefetchScalarGridSpec(
            num_scalar_prefetch=0,
            grid=(Bp // Bt,),
            in_specs=in_specs,
            out_specs=[pl.BlockSpec((Bt, T, D), lambda b: (b, 0, 0)),
                       pl.BlockSpec((Bt, T, 5), lambda b: (b, 0, 0))],
        ),
        compiler_params=pltpu.CompilerParams(
            dimension_semantics=("parallel",),
            vmem_limit_bytes=vmem_limit_bytes),
    )(*args)

    if Bp != B:
        feat, emo = feat[:B], emo[:B]
    return feat, emo


# ----------------------------- pure-JAX reference ----------------------------

def intensity_extractor_ref(x, params, *, num_heads):
    def lin(h, w, b):
        return h @ w.T + b

    def ln(z, g, b):
        mu = jnp.mean(z, -1, keepdims=True)
        var = jnp.mean((z - mu) ** 2, -1, keepdims=True)
        return (z - mu) / jnp.sqrt(var + 1e-5) * g + b

    B, T, _ = x.shape
    D = params["w_in"].shape[0]
    hd = D // num_heads

    h = lin(x, params["w_in"], params["b_in"])
    q = lin(h, params["wq"], params["bq"]).reshape(B, T, num_heads, hd)
    k = lin(h, params["wk"], params["bk"]).reshape(B, T, num_heads, hd)
    v = lin(h, params["wv"], params["bv"]).reshape(B, T, num_heads, hd)
    s = jnp.einsum("bqhd,bkhd->bhqk", q, k) / math.sqrt(hd)
    p = jax.nn.softmax(s, axis=-1)
    a = jnp.einsum("bhqk,bkhd->bqhd", p, v).reshape(B, T, D)
    a = lin(a, params["wo"], params["bo"])
    x1 = ln(h + a, params["g1"], params["be1"])
    ff = lin(jax.nn.relu(lin(x1, params["w1"], params["b1"])),
             params["w2"], params["b2"])
    x2 = ln(x1 + ff, params["g2"], params["be2"])
    y = lin(x2, params["wc"], params["bc"])
    emo = lin(y, params["we"], params["bee"])
    feat = lin(y, params["wf"], params["bf"])
    return feat, emo


# ----------------------------- main -------------------------------------------

if __name__ == "__main__":
    B, T = 2, 8
    mel_dim, pitch_dim, energy_dim = 20, 6, 6
    Din = mel_dim + pitch_dim + energy_dim          # 32
    fft_dim = 32
    num_heads = 4

    key = jax.random.PRNGKey(0)

    def nxt():
        global key
        key, sub = jax.random.split(key)
        return sub

    def w(shape, scale=0.1):
        return jax.random.normal(nxt(), shape, jnp.float32) * scale

    params = {
        # input projection
        "w_in": w((fft_dim, Din)), "b_in": w((fft_dim,)),
        # self-attention (PyTorch stores q/k/v stacked; kept split here)
        "wq": w((fft_dim, fft_dim)), "bq": w((fft_dim,)),
        "wk": w((fft_dim, fft_dim)), "bk": w((fft_dim,)),
        "wv": w((fft_dim, fft_dim)), "bv": w((fft_dim,)),
        "wo": w((fft_dim, fft_dim)), "bo": w((fft_dim,)),
        # layernorm 1
        "g1": jnp.ones((fft_dim,), jnp.float32),
        "be1": jnp.zeros((fft_dim,), jnp.float32),
        # feed-forward (dim_feedforward == fft_dim)
        "w1": w((fft_dim, fft_dim)), "b1": w((fft_dim,)),
        "w2": w((fft_dim, fft_dim)), "b2": w((fft_dim,)),
        # layernorm 2
        "g2": jnp.ones((fft_dim,), jnp.float32),
        "be2": jnp.zeros((fft_dim,), jnp.float32),
        # conv1d, kernel_size=1 -> weight (D, D, 1) squeezed to (D, D)
        "wc": w((fft_dim, fft_dim)), "bc": w((fft_dim,)),
        # emotion prediction head
        "we": w((5, fft_dim)), "bee": w((5,)),
        # feature projection head
        "wf": w((fft_dim, fft_dim)), "bf": w((fft_dim,)),
    }

    mel = jax.random.normal(nxt(), (B, T, mel_dim), jnp.float32)
    pitch = jax.random.normal(nxt(), (B, T, pitch_dim), jnp.float32)
    energy = jax.random.normal(nxt(), (B, T, energy_dim), jnp.float32)

    # concatenation is glue; done in plain JAX
    x = jnp.concatenate([mel, pitch, energy], axis=-1)      # (B, T, Din)

    feat_ref, emo_ref = intensity_extractor_ref(x, params, num_heads=num_heads)

    # f32 matmul path: tight parity with the reference
    feat32, emo32 = intensity_extractor_pallas(
        x, params, num_heads=num_heads, matmul_dtype=jnp.float32)
    jax.block_until_ready((feat32, emo32))
    assert feat32.shape == (B, T, fft_dim) and emo32.shape == (B, T, 5)
    assert jnp.allclose(feat32, feat_ref, atol=3e-3, rtol=3e-3), \
        float(jnp.abs(feat32 - feat_ref).max())
    assert jnp.allclose(emo32, emo_ref, atol=3e-3, rtol=3e-3), \
        float(jnp.abs(emo32 - emo_ref).max())

    # default bf16 matmul path (MXU-native on v6e/v7x); looser tolerance
    feat_bf, emo_bf = intensity_extractor_pallas(x, params, num_heads=num_heads)
    jax.block_until_ready((feat_bf, emo_bf))
    assert jnp.allclose(feat_bf, feat_ref, atol=5e-2, rtol=5e-2), \
        float(jnp.abs(feat_bf - feat_ref).max())
    assert jnp.allclose(emo_bf, emo_ref, atol=5e-2, rtol=5e-2), \
        float(jnp.abs(emo_bf - emo_ref).max())

    print("KERNEL_OK")
</pallas_src>

<mosaic_0001>
module attributes {stable_mosaic.version = 11 : i64} {
  func.func @_intensity_kernel(%arg0: i32, %arg1: memref<1x8x32xf32, #tpu.memory_space<vmem>>, %arg2: memref<32x32xf32, #tpu.memory_space<vmem>>, %arg3: memref<32x96xf32, #tpu.memory_space<vmem>>, %arg4: memref<1x96xf32, #tpu.memory_space<vmem>>, %arg5: memref<4x32x32xf32, #tpu.memory_space<vmem>>, %arg6: memref<32x5xf32, #tpu.memory_space<vmem>>, %arg7: memref<1x5xf32, #tpu.memory_space<vmem>>, %arg8: memref<9x32xf32, #tpu.memory_space<vmem>>, %arg9: memref<1x8x32xf32, #tpu.memory_space<vmem>>, %arg10: memref<1x8x5xf32, #tpu.memory_space<vmem>>) attributes {dimension_semantics = [#tpu.dimension_semantics<parallel>], iteration_bounds = array<i64: 2>, scalar_prefetch = 0 : i64, scratch_operands = 0 : i64, tpu.core_type = #tpu.core_type<tc>, window_params = [{transform_indices = @transform_0, window_bounds = array<i64: 1, 8, 32>}, {pipeline_mode = #tpu.pipeline_mode<synchronous>, transform_indices = @transform_1, window_bounds = array<i64: 32, 32>}, {pipeline_mode = #tpu.pipeline_mode<synchronous>, transform_indices = @transform_2, window_bounds = array<i64: 32, 96>}, {pipeline_mode = #tpu.pipeline_mode<synchronous>, transform_indices = @transform_3, window_bounds = array<i64: 1, 96>}, {pipeline_mode = #tpu.pipeline_mode<synchronous>, transform_indices = @transform_4, window_bounds = array<i64: 4, 32, 32>}, {pipeline_mode = #tpu.pipeline_mode<synchronous>, transform_indices = @transform_5, window_bounds = array<i64: 32, 5>}, {pipeline_mode = #tpu.pipeline_mode<synchronous>, transform_indices = @transform_6, window_bounds = array<i64: 1, 5>}, {pipeline_mode = #tpu.pipeline_mode<synchronous>, transform_indices = @transform_7, window_bounds = array<i64: 9, 32>}, {transform_indices = @transform_8, window_bounds = array<i64: 1, 8, 32>}, {transform_indices = @transform_9, window_bounds = array<i64: 1, 8, 5>}]} {
    %c0 = arith.constant 0 : index
    %c0_0 = arith.constant 0 : index
    %0 = vector.load %arg8[%c0, %c0_0] : memref<9x32xf32, #tpu.memory_space<vmem>>, vector<9x32xf32>
    %1 = vector.extract_strided_slice %0 {offsets = [0, 0], sizes = [1, 32], strides = [1, 1]} : vector<9x32xf32> to vector<1x32xf32>
    %2 = vector.extract_strided_slice %0 {offsets = [1, 0], sizes = [1, 32], strides = [1, 1]} : vector<9x32xf32> to vector<1x32xf32>
    %3 = vector.extract_strided_slice %0 {offsets = [2, 0], sizes = [1, 32], strides = [1, 1]} : vector<9x32xf32> to vector<1x32xf32>
    %4 = vector.extract_strided_slice %0 {offsets = [3, 0], sizes = [1, 32], strides = [1, 1]} : vector<9x32xf32> to vector<1x32xf32>
    %5 = vector.extract_strided_slice %0 {offsets = [4, 0], sizes = [1, 32], strides = [1, 1]} : vector<9x32xf32> to vector<1x32xf32>
    %6 = vector.extract_strided_slice %0 {offsets = [5, 0], sizes = [1, 32], strides = [1, 1]} : vector<9x32xf32> to vector<1x32xf32>
    %7 = vector.extract_strided_slice %0 {offsets = [6, 0], sizes = [1, 32], strides = [1, 1]} : vector<9x32xf32> to vector<1x32xf32>
    %8 = vector.extract_strided_slice %0 {offsets = [7, 0], sizes = [1, 32], strides = [1, 1]} : vector<9x32xf32> to vector<1x32xf32>
    %9 = vector.extract_strided_slice %0 {offsets = [8, 0], sizes = [1, 32], strides = [1, 1]} : vector<9x32xf32> to vector<1x32xf32>
    %c0_1 = arith.constant 0 : index
    %c0_2 = arith.constant 0 : index
    %c0_3 = arith.constant 0 : index
    %10 = vector.load %arg1[%c0_1, %c0_2, %c0_3] : memref<1x8x32xf32, #tpu.memory_space<vmem>>, vector<1x8x32xf32>
    %11 = vector.shape_cast %10 : vector<1x8x32xf32> to vector<8x32xf32>
    %c0_4 = arith.constant 0 : index
    %c0_5 = arith.constant 0 : index
    %12 = vector.load %arg2[%c0_4, %c0_5] : memref<32x32xf32, #tpu.memory_space<vmem>>, vector<32x32xf32>
    %cst = arith.constant dense<0.000000e+00> : vector<8x32xf32>
    %13 = tpu.matmul %11, %12, %cst {dimension_numbers = #tpu.dot_dimension_numbers<[1], [0], [0], [1], [0, 0, 1, 1], [], []>} : vector<8x32xf32>, vector<32x32xf32>, vector<8x32xf32> -> vector<8x32xf32>
    %14 = vector.broadcast %1 : vector<1x32xf32> to vector<8x32xf32>
    %15 = arith.addf %13, %14 : vector<8x32xf32>
    %c0_6 = arith.constant 0 : index
    %c0_7 = arith.constant 0 : index
    %16 = vector.load %arg3[%c0_6, %c0_7] : memref<32x96xf32, #tpu.memory_space<vmem>>, vector<32x96xf32>
    %cst_8 = arith.constant dense<0.000000e+00> : vector<8x96xf32>
    %17 = tpu.matmul %15, %16, %cst_8 {dimension_numbers = #tpu.dot_dimension_numbers<[1], [0], [0], [1], [0, 0, 1, 1], [], []>} : vector<8x32xf32>, vector<32x96xf32>, vector<8x96xf32> -> vector<8x96xf32>
    %c0_9 = arith.constant 0 : index
    %c0_10 = arith.constant 0 : index
    %18 = vector.load %arg4[%c0_9, %c0_10] : memref<1x96xf32, #tpu.memory_space<vmem>>, vector<1x96xf32>
    %19 = vector.broadcast %18 : vector<1x96xf32> to vector<8x96xf32>
    %20 = arith.addf %17, %19 : vector<8x96xf32>
    %21 = vector.extract_strided_slice %20 {offsets = [0, 0], sizes = [8, 32], strides = [1, 1]} : vector<8x96xf32> to vector<8x32xf32>
    %22 = vector.shape_cast %21 : vector<8x32xf32> to vector<1x8x32xf32>
    %23 = vector.extract_strided_slice %20 {offsets = [0, 32], sizes = [8, 32], strides = [1, 1]} : vector<8x96xf32> to vector<8x32xf32>
    %24 = vector.shape_cast %23 : vector<8x32xf32> to vector<1x8x32xf32>
    %25 = vector.extract_strided_slice %20 {offsets = [0, 64], sizes = [8, 32], strides = [1, 1]} : vector<8x96xf32> to vector<8x32xf32>
    %26 = vector.shape_cast %25 : vector<8x32xf32> to vector<1x8x32xf32>
    %27 = vector.extract_strided_slice %22 {offsets = [0, 0, 0], sizes = [1, 8, 8], strides = [1, 1, 1]} : vector<1x8x32xf32> to vector<1x8x8xf32>
    %28 = vector.extract_strided_slice %24 {offsets = [0, 0, 0], sizes = [1, 8, 8], strides = [1, 1, 1]} : vector<1x8x32xf32> to vector<1x8x8xf32>
    "tpu.trace_start"() <{level = 10 : i32, message = "bqd,bkd->bqk"}> : () -> ()
    %cst_11 = arith.constant dense<0.000000e+00> : vector<1x8x8xf32>
    %29 = tpu.matmul %27, %28, %cst_11 {dimension_numbers = #tpu.dot_dimension_numbers<[2], [2], [1], [1], [0, 0, 0, 1, 1, 1], [0], [0]>} : vector<1x8x8xf32>, vector<1x8x8xf32>, vector<1x8x8xf32> -> vector<1x8x8xf32>
    "tpu.trace_stop"() : () -> ()
    %cst_12 = arith.constant dense<0xFF800000> : vector<1x8xf32>
    %30 = vector.multi_reduction <maximumf>, %29, %cst_12 [2] : vector<1x8x8xf32> to vector<1x8xf32>
    %31 = vector.shape_cast %30 : vector<1x8xf32> to vector<1x8x1xf32>
    %32 = vector.broadcast %31 : vector<1x8x1xf32> to vector<1x8x8xf32>
    %33 = arith.subf %29, %32 : vector<1x8x8xf32>
    %34 = math.exp %33 : vector<1x8x8xf32>
    %cst_13 = arith.constant dense<0.000000e+00> : vector<1x8xf32>
    %35 = vector.multi_reduction <add>, %34, %cst_13 [2] : vector<1x8x8xf32> to vector<1x8xf32>
    %36 = vector.shape_cast %35 : vector<1x8xf32> to vector<1x8x1xf32>
    %37 = tpu.reciprocal %36 {approx = true} : vector<1x8x1xf32> -> vector<1x8x1xf32>
    %38 = vector.broadcast %37 : vector<1x8x1xf32> to vector<1x8x8xf32>
    %39 = arith.mulf %34, %38 : vector<1x8x8xf32>
    %40 = vector.extract_strided_slice %26 {offsets = [0, 0, 0], sizes = [1, 8, 8], strides = [1, 1, 1]} : vector<1x8x32xf32> to vector<1x8x8xf32>
    "tpu.trace_start"() <{level = 10 : i32, message = "bqk,bkd->bqd"}> : () -> ()
    %cst_14 = arith.constant dense<0.000000e+00> : vector<1x8x8xf32>
    %41 = tpu.matmul %39, %40, %cst_14 {dimension_numbers = #tpu.dot_dimension_numbers<[2], [1], [1], [2], [0, 0, 0, 1, 1, 2], [0], [0]>} : vector<1x8x8xf32>, vector<1x8x8xf32>, vector<1x8x8xf32> -> vector<1x8x8xf32>
    "tpu.trace_stop"() : () -> ()
    %42 = vector.extract_strided_slice %22 {offsets = [0, 0, 8], sizes = [1, 8, 8], strides = [1, 1, 1]} : vector<1x8x32xf32> to vector<1x8x8xf32>
    %43 = vector.extract_strided_slice %24 {offsets = [0, 0, 8], sizes = [1, 8, 8], strides = [1, 1, 1]} : vector<1x8x32xf32> to vector<1x8x8xf32>
    "tpu.trace_start"() <{level = 10 : i32, message = "bqd,bkd->bqk"}> : () -> ()
    %cst_15 = arith.constant dense<0.000000e+00> : vector<1x8x8xf32>
    %44 = tpu.matmul %42, %43, %cst_15 {dimension_numbers = #tpu.dot_dimension_numbers<[2], [2], [1], [1], [0, 0, 0, 1, 1, 1], [0], [0]>} : vector<1x8x8xf32>, vector<1x8x8xf32>, vector<1x8x8xf32> -> vector<1x8x8xf32>
    "tpu.trace_stop"() : () -> ()
    %cst_16 = arith.constant dense<0xFF800000> : vector<1x8xf32>
    %45 = vector.multi_reduction <maximumf>, %44, %cst_16 [2] : vector<1x8x8xf32> to vector<1x8xf32>
    %46 = vector.shape_cast %45 : vector<1x8xf32> to vector<1x8x1xf32>
    %47 = vector.broadcast %46 : vector<1x8x1xf32> to vector<1x8x8xf32>
    %48 = arith.subf %44, %47 : vector<1x8x8xf32>
    %49 = math.exp %48 : vector<1x8x8xf32>
    %cst_17 = arith.constant dense<0.000000e+00> : vector<1x8xf32>
    %50 = vector.multi_reduction <add>, %49, %cst_17 [2] : vector<1x8x8xf32> to vector<1x8xf32>
    %51 = vector.shape_cast %50 : vector<1x8xf32> to vector<1x8x1xf32>
    %52 = tpu.reciprocal %51 {approx = true} : vector<1x8x1xf32> -> vector<1x8x1xf32>
    %53 = vector.broadcast %52 : vector<1x8x1xf32> to vector<1x8x8xf32>
    %54 = arith.mulf %49, %53 : vector<1x8x8xf32>
    %55 = vector.extract_strided_slice %26 {offsets = [0, 0, 8], sizes = [1, 8, 8], strides = [1, 1, 1]} : vector<1x8x32xf32> to vector<1x8x8xf32>
    "tpu.trace_start"() <{level = 10 : i32, message = "bqk,bkd->bqd"}> : () -> ()
    %cst_18 = arith.constant dense<0.000000e+00> : vector<1x8x8xf32>
    %56 = tpu.matmul %54, %55, %cst_18 {dimension_numbers = #tpu.dot_dimension_numbers<[2], [1], [1], [2], [0, 0, 0, 1, 1, 2], [0], [0]>} : vector<1x8x8xf32>, vector<1x8x8xf32>, vector<1x8x8xf32> -> vector<1x8x8xf32>
    "tpu.trace_stop"() : () -> ()
    %57 = vector.extract_strided_slice %22 {offsets = [0, 0, 16], sizes = [1, 8, 8], strides = [1, 1, 1]} : vector<1x8x32xf32> to vector<1x8x8xf32>
    %58 = vector.extract_strided_slice %24 {offsets = [0, 0, 16], sizes = [1, 8, 8], strides = [1, 1, 1]} : vector<1x8x32xf32> to vector<1x8x8xf32>
    "tpu.trace_start"() <{level = 10 : i32, message = "bqd,bkd->bqk"}> : () -> ()
    %cst_19 = arith.constant dense<0.000000e+00> : vector<1x8x8xf32>
    %59 = tpu.matmul %57, %58, %cst_19 {dimension_numbers = #tpu.dot_dimension_numbers<[2], [2], [1], [1], [0, 0, 0, 1, 1, 1], [0], [0]>} : vector<1x8x8xf32>, vector<1x8x8xf32>, vector<1x8x8xf32> -> vector<1x8x8xf32>
    "tpu.trace_stop"() : () -> ()
    %cst_20 = arith.constant dense<0xFF800000> : vector<1x8xf32>
    %60 = vector.multi_reduction <maximumf>, %59, %cst_20 [2] : vector<1x8x8xf32> to vector<1x8xf32>
    %61 = vector.shape_cast %60 : vector<1x8xf32> to vector<1x8x1xf32>
    %62 = vector.broadcast %61 : vector<1x8x1xf32> to vector<1x8x8xf32>
    %63 = arith.subf %59, %62 : vector<1x8x8xf32>
    %64 = math.exp %63 : vector<1x8x8xf32>
    %cst_21 = arith.constant dense<0.000000e+00> : vector<1x8xf32>
    %65 = vector.multi_reduction <add>, %64, %cst_21 [2] : vector<1x8x8xf32> to vector<1x8xf32>
    %66 = vector.shape_cast %65 : vector<1x8xf32> to vector<1x8x1xf32>
    %67 = tpu.reciprocal %66 {approx = true} : vector<1x8x1xf32> -> vector<1x8x1xf32>
    %68 = vector.broadcast %67 : vector<1x8x1xf32> to vector<1x8x8xf32>
    %69 = arith.mulf %64, %68 : vector<1x8x8xf32>
    %70 = vector.extract_strided_slice %26 {offsets = [0, 0, 16], sizes = [1, 8, 8], strides = [1, 1, 1]} : vector<1x8x32xf32> to vector<1x8x8xf32>
    "tpu.trace_start"() <{level = 10 : i32, message = "bqk,bkd->bqd"}> : () -> ()
    %cst_22 = arith.constant dense<0.000000e+00> : vector<1x8x8xf32>
    %71 = tpu.matmul %69, %70, %cst_22 {dimension_numbers = #tpu.dot_dimension_numbers<[2], [1], [1], [2], [0, 0, 0, 1, 1, 2], [0], [0]>} : vector<1x8x8xf32>, vector<1x8x8xf32>, vector<1x8x8xf32> -> vector<1x8x8xf32>
    "tpu.trace_stop"() : () -> ()
    %72 = vector.extract_strided_slice %22 {offsets = [0, 0, 24], sizes = [1, 8, 8], strides = [1, 1, 1]} : vector<1x8x32xf32> to vector<1x8x8xf32>
    %73 = vector.extract_strided_slice %24 {offsets = [0, 0, 24], sizes = [1, 8, 8], strides = [1, 1, 1]} : vector<1x8x32xf32> to vector<1x8x8xf32>
    "tpu.trace_start"() <{level = 10 : i32, message = "bqd,bkd->bqk"}> : () -> ()
    %cst_23 = arith.constant dense<0.000000e+00> : vector<1x8x8xf32>
    %74 = tpu.matmul %72, %73, %cst_23 {dimension_numbers = #tpu.dot_dimension_numbers<[2], [2], [1], [1], [0, 0, 0, 1, 1, 1], [0], [0]>} : vector<1x8x8xf32>, vector<1x8x8xf32>, vector<1x8x8xf32> -> vector<1x8x8xf32>
    "tpu.trace_stop"() : () -> ()
    %cst_24 = arith.constant dense<0xFF800000> : vector<1x8xf32>
    %75 = vector.multi_reduction <maximumf>, %74, %cst_24 [2] : vector<1x8x8xf32> to vector<1x8xf32>
    %76 = vector.shape_cast %75 : vector<1x8xf32> to vector<1x8x1xf32>
    %77 = vector.broadcast %76 : vector<1x8x1xf32> to vector<1x8x8xf32>
    %78 = arith.subf %74, %77 : vector<1x8x8xf32>
    %79 = math.exp %78 : vector<1x8x8xf32>
    %cst_25 = arith.constant dense<0.000000e+00> : vector<1x8xf32>
    %80 = vector.multi_reduction <add>, %79, %cst_25 [2] : vector<1x8x8xf32> to vector<1x8xf32>
    %81 = vector.shape_cast %80 : vector<1x8xf32> to vector<1x8x1xf32>
    %82 = tpu.reciprocal %81 {approx = true} : vector<1x8x1xf32> -> vector<1x8x1xf32>
    %83 = vector.broadcast %82 : vector<1x8x1xf32> to vector<1x8x8xf32>
    %84 = arith.mulf %79, %83 : vector<1x8x8xf32>
    %85 = vector.extract_strided_slice %26 {offsets = [0, 0, 24], sizes = [1, 8, 8], strides = [1, 1, 1]} : vector<1x8x32xf32> to vector<1x8x8xf32>
    "tpu.trace_start"() <{level = 10 : i32, message = "bqk,bkd->bqd"}> : () -> ()
    %cst_26 = arith.constant dense<0.000000e+00> : vector<1x8x8xf32>
    %86 = tpu.matmul %84, %85, %cst_26 {dimension_numbers = #tpu.dot_dimension_numbers<[2], [1], [1], [2], [0, 0, 0, 1, 1, 2], [0], [0]>} : vector<1x8x8xf32>, vector<1x8x8xf32>, vector<1x8x8xf32> -> vector<1x8x8xf32>
    "tpu.trace_stop"() : () -> ()
    %87 = tpu.concatenate %41, %56, %71, %86 in 2 : vector<1x8x8xf32>, vector<1x8x8xf32>, vector<1x8x8xf32>, vector<1x8x8xf32> -> vector<1x8x32xf32>
    %88 = vector.shape_cast %87 : vector<1x8x32xf32> to vector<8x32xf32>
    %c0_27 = arith.constant 0 : index
    %c0_28 = arith.constant 0 : index
    %c0_29 = arith.constant 0 : index
    %89 = vector.load %arg5[%c0_27, %c0_28, %c0_29] : memref<4x32x32xf32, #tpu.memory_space<vmem>>, vector<1x32x32xf32>
    %90 = vector.shape_cast %89 : vector<1x32x32xf32> to vector<32x32xf32>
    %cst_30 = arith.constant dense<0.000000e+00> : vector<8x32xf32>
    %91 = tpu.matmul %88, %90, %cst_30 {dimension_numbers = #tpu.dot_dimension_numbers<[1], [0], [0], [1], [0, 0, 1, 1], [], []>} : vector<8x32xf32>, vector<32x32xf32>, vector<8x32xf32> -> vector<8x32xf32>
    %92 = vector.broadcast %2 : vector<1x32xf32> to vector<8x32xf32>
    %93 = arith.addf %91, %92 : vector<8x32xf32>
    %94 = arith.addf %15, %93 : vector<8x32xf32>
    %cst_31 = arith.constant dense<0.000000e+00> : vector<8xf32>
    %95 = vector.multi_reduction <add>, %94, %cst_31 [1] : vector<8x32xf32> to vector<8xf32>
    %96 = vector.shape_cast %95 : vector<8xf32> to vector<8x1xf32>
    %cst_32 = arith.constant 3.200000e+01 : f32
    %97 = vector.broadcast %cst_32 : f32 to vector<8x1xf32>
    %98 = arith.divf %96, %97 : vector<8x1xf32>
    %99 = vector.broadcast %98 : vector<8x1xf32> to vector<8x32xf32>
    %100 = arith.subf %94, %99 : vector<8x32xf32>
    %101 = arith.mulf %100, %100 : vector<8x32xf32>
    %cst_33 = arith.constant dense<0.000000e+00> : vector<8xf32>
    %102 = vector.multi_reduction <add>, %101, %cst_33 [1] : vector<8x32xf32> to vector<8xf32>
    %103 = vector.shape_cast %102 : vector<8xf32> to vector<8x1xf32>
    %cst_34 = arith.constant 3.200000e+01 : f32
    %104 = vector.broadcast %cst_34 : f32 to vector<8x1xf32>
    %105 = arith.divf %103, %104 : vector<8x1xf32>
    %106 = vector.broadcast %98 : vector<8x1xf32> to vector<8x32xf32>
    %107 = arith.subf %94, %106 : vector<8x32xf32>
    %cst_35 = arith.constant 9.99999974E-6 : f32
    %108 = vector.broadcast %cst_35 : f32 to vector<8x1xf32>
    %109 = arith.addf %105, %108 : vector<8x1xf32>
    %110 = math.rsqrt %109 : vector<8x1xf32>
    %111 = vector.broadcast %110 : vector<8x1xf32> to vector<8x32xf32>
    %112 = arith.mulf %107, %111 : vector<8x32xf32>
    %113 = vector.broadcast %3 : vector<1x32xf32> to vector<8x32xf32>
    %114 = arith.mulf %112, %113 : vector<8x32xf32>
    %115 = vector.broadcast %4 : vector<1x32xf32> to vector<8x32xf32>
    %116 = arith.addf %114, %115 : vector<8x32xf32>
    %c1 = arith.constant 1 : index
    %c0_36 = arith.constant 0 : index
    %c0_37 = arith.constant 0 : index
    %117 = vector.load %arg5[%c1, %c0_36, %c0_37] : memref<4x32x32xf32, #tpu.memory_space<vmem>>, vector<1x32x32xf32>
    %118 = vector.shape_cast %117 : vector<1x32x32xf32> to vector<32x32xf32>
    %cst_38 = arith.constant dense<0.000000e+00> : vector<8x32xf32>
    %119 = tpu.matmul %116, %118, %cst_38 {dimension_numbers = #tpu.dot_dimension_numbers<[1], [0], [0], [1], [0, 0, 1, 1], [], []>} : vector<8x32xf32>, vector<32x32xf32>, vector<8x32xf32> -> vector<8x32xf32>
    %120 = vector.broadcast %5 : vector<1x32xf32> to vector<8x32xf32>
    %121 = arith.addf %119, %120 : vector<8x32xf32>
    %cst_39 = arith.constant 0.000000e+00 : f32
    %122 = vector.broadcast %cst_39 : f32 to vector<8x32xf32>
    %123 = arith.maximumf %121, %122 : vector<8x32xf32>
    %c2 = arith.constant 2 : index
    %c0_40 = arith.constant 0 : index
    %c0_41 = arith.constant 0 : index
    %124 = vector.load %arg5[%c2, %c0_40, %c0_41] : memref<4x32x32xf32, #tpu.memory_space<vmem>>, vector<1x32x32xf32>
    %125 = vector.shape_cast %124 : vector<1x32x32xf32> to vector<32x32xf32>
    %cst_42 = arith.constant dense<0.000000e+00> : vector<8x32xf32>
    %126 = tpu.matmul %123, %125, %cst_42 {dimension_numbers = #tpu.dot_dimension_numbers<[1], [0], [0], [1], [0, 0, 1, 1], [], []>} : vector<8x32xf32>, vector<32x32xf32>, vector<8x32xf32> -> vector<8x32xf32>
    %127 = vector.broadcast %6 : vector<1x32xf32> to vector<8x32xf32>
    %128 = arith.addf %126, %127 : vector<8x32xf32>
    %129 = arith.addf %116, %128 : vector<8x32xf32>
    %cst_43 = arith.constant dense<0.000000e+00> : vector<8xf32>
    %130 = vector.multi_reduction <add>, %129, %cst_43 [1] : vector<8x32xf32> to vector<8xf32>
    %131 = vector.shape_cast %130 : vector<8xf32> to vector<8x1xf32>
    %cst_44 = arith.constant 3.200000e+01 : f32
    %132 = vector.broadcast %cst_44 : f32 to vector<8x1xf32>
    %133 = arith.divf %131, %132 : vector<8x1xf32>
    %134 = vector.broadcast %133 : vector<8x1xf32> to vector<8x32xf32>
    %135 = arith.subf %129, %134 : vector<8x32xf32>
    %136 = arith.mulf %135, %135 : vector<8x32xf32>
    %cst_45 = arith.constant dense<0.000000e+00> : vector<8xf32>
    %137 = vector.multi_reduction <add>, %136, %cst_45 [1] : vector<8x32xf32> to vector<8xf32>
    %138 = vector.shape_cast %137 : vector<8xf32> to vector<8x1xf32>
    %cst_46 = arith.constant 3.200000e+01 : f32
    %139 = vector.broadcast %cst_46 : f32 to vector<8x1xf32>
    %140 = arith.divf %138, %139 : vector<8x1xf32>
    %141 = vector.broadcast %133 : vector<8x1xf32> to vector<8x32xf32>
    %142 = arith.subf %129, %141 : vector<8x32xf32>
    %cst_47 = arith.constant 9.99999974E-6 : f32
    %143 = vector.broadcast %cst_47 : f32 to vector<8x1xf32>
    %144 = arith.addf %140, %143 : vector<8x1xf32>
    %145 = math.rsqrt %144 : vector<8x1xf32>
    %146 = vector.broadcast %145 : vector<8x1xf32> to vector<8x32xf32>
    %147 = arith.mulf %142, %146 : vector<8x32xf32>
    %148 = vector.broadcast %7 : vector<1x32xf32> to vector<8x32xf32>
    %149 = arith.mulf %147, %148 : vector<8x32xf32>
    %150 = vector.broadcast %8 : vector<1x32xf32> to vector<8x32xf32>
    %151 = arith.addf %149, %150 : vector<8x32xf32>
    %c3 = arith.constant 3 : index
    %c0_48 = arith.constant 0 : index
    %c0_49 = arith.constant 0 : index
    %152 = vector.load %arg5[%c3, %c0_48, %c0_49] : memref<4x32x32xf32, #tpu.memory_space<vmem>>, vector<1x32x32xf32>
    %153 = vector.shape_cast %152 : vector<1x32x32xf32> to vector<32x32xf32>
    %cst_50 = arith.constant dense<0.000000e+00> : vector<8x32xf32>
    %154 = tpu.matmul %151, %153, %cst_50 {dimension_numbers = #tpu.dot_dimension_numbers<[1], [0], [0], [1], [0, 0, 1, 1], [], []>} : vector<8x32xf32>, vector<32x32xf32>, vector<8x32xf32> -> vector<8x32xf32>
    %155 = vector.broadcast %9 : vector<1x32xf32> to vector<8x32xf32>
    %156 = arith.addf %154, %155 : vector<8x32xf32>
    %c0_51 = arith.constant 0 : index
    %c0_52 = arith.constant 0 : index
    %157 = vector.load %arg6[%c0_51, %c0_52] : memref<32x5xf32, #tpu.memory_space<vmem>>, vector<32x5xf32>
    %cst_53 = arith.constant dense<0.000000e+00> : vector<8x5xf32>
    %158 = tpu.matmul %151, %157, %cst_53 {dimension_numbers = #tpu.dot_dimension_numbers<[1], [0], [0], [1], [0, 0, 1, 1], [], []>} : vector<8x32xf32>, vector<32x5xf32>, vector<8x5xf32> -> vector<8x5xf32>
    %c0_54 = arith.constant 0 : index
    %c0_55 = arith.constant 0 : index
    %159 = vector.load %arg7[%c0_54, %c0_55] : memref<1x5xf32, #tpu.memory_space<vmem>>, vector<1x5xf32>
    %160 = vector.broadcast %159 : vector<1x5xf32> to vector<8x5xf32>
    %161 = arith.addf %158, %160 : vector<8x5xf32>
    %162 = vector.shape_cast %156 : vector<8x32xf32> to vector<1x8x32xf32>
    %c0_56 = arith.constant 0 : index
    %c0_57 = arith.constant 0 : index
    %c0_58 = arith.constant 0 : index
    %163 = vector.load %arg9[%c0_56, %c0_57, %c0_58] : memref<1x8x32xf32, #tpu.memory_space<vmem>>, vector<1x8x32xf32>
    tpu.vector_store %arg9[%c0_56, %c0_57, %c0_58], %162 {strides = array<i32>} : memref<1x8x32xf32, #tpu.memory_space<vmem>>, vector<1x8x32xf32>,
    %164 = vector.shape_cast %161 : vector<8x5xf32> to vector<1x8x5xf32>
    %c0_59 = arith.constant 0 : index
    %c0_60 = arith.constant 0 : index
    %c0_61 = arith.constant 0 : index
    %165 = vector.load %arg10[%c0_59, %c0_60, %c0_61] : memref<1x8x5xf32, #tpu.memory_space<vmem>>, vector<1x8x5xf32>
    tpu.vector_store %arg10[%c0_59, %c0_60, %c0_61], %164 {strides = array<i32>} : memref<1x8x5xf32, #tpu.memory_space<vmem>>, vector<1x8x5xf32>,
    return
  }
  func.func @transform_0(%arg0: i32) -> (i32, i32, i32) {
    %c0_i32 = arith.constant 0 : i32
    %c0_i32_0 = arith.constant 0 : i32
    %c0_i32_1 = arith.constant 0 : i32
    return %arg0, %c0_i32, %c0_i32_0 : i32, i32, i32
  }
  func.func @transform_1(%arg0: i32) -> (i32, i32) {
    %c0_i32 = arith.constant 0 : i32
    %c0_i32_0 = arith.constant 0 : i32
    %c0_i32_1 = arith.constant 0 : i32
    return %c0_i32, %c0_i32_0 : i32, i32
  }
  func.func @transform_2(%arg0: i32) -> (i32, i32) {
    %c0_i32 = arith.constant 0 : i32
    %c0_i32_0 = arith.constant 0 : i32
    %c0_i32_1 = arith.constant 0 : i32
    return %c0_i32, %c0_i32_0 : i32, i32
  }
  func.func @transform_3(%arg0: i32) -> (i32, i32) {
    %c0_i32 = arith.constant 0 : i32
    %c0_i32_0 = arith.constant 0 : i32
    %c0_i32_1 = arith.constant 0 : i32
    return %c0_i32, %c0_i32_0 : i32, i32
  }
  func.func @transform_4(%arg0: i32) -> (i32, i32, i32) {
    %c0_i32 = arith.constant 0 : i32
    %c0_i32_0 = arith.constant 0 : i32
    %c0_i32_1 = arith.constant 0 : i32
    %c0_i32_2 = arith.constant 0 : i32
    return %c0_i32, %c0_i32_0, %c0_i32_1 : i32, i32, i32
  }
  func.func @transform_5(%arg0: i32) -> (i32, i32) {
    %c0_i32 = arith.constant 0 : i32
    %c0_i32_0 = arith.constant 0 : i32
    %c0_i32_1 = arith.constant 0 : i32
    return %c0_i32, %c0_i32_0 : i32, i32
  }
  func.func @transform_6(%arg0: i32) -> (i32, i32) {
    %c0_i32 = arith.constant 0 : i32
    %c0_i32_0 = arith.constant 0 : i32
    %c0_i32_1 = arith.constant 0 : i32
    return %c0_i32, %c0_i32_0 : i32, i32
  }
  func.func @transform_7(%arg0: i32) -> (i32, i32) {
    %c0_i32 = arith.constant 0 : i32
    %c0_i32_0 = arith.constant 0 : i32
    %c0_i32_1 = arith.constant 0 : i32
    return %c0_i32, %c0_i32_0 : i32, i32
  }
  func.func @transform_8(%arg0: i32) -> (i32, i32, i32) {
    %c0_i32 = arith.constant 0 : i32
    %c0_i32_0 = arith.constant 0 : i32
    %c0_i32_1 = arith.constant 0 : i32
    return %arg0, %c0_i32, %c0_i32_0 : i32, i32, i32
  }
  func.func @transform_9(%arg0: i32) -> (i32, i32, i32) {
    %c0_i32 = arith.constant 0 : i32
    %c0_i32_0 = arith.constant 0 : i32
    %c0_i32_1 = arith.constant 0 : i32
    return %arg0, %c0_i32, %c0_i32_0 : i32, i32, i32
  }
}

</mosaic_0001>

<llo_original>
// kernel: tpu_custom_call.1
$region0: #{tpu_custom_call.1}
  #allocation0 [shape = 'u32[]', space=smem, size = 0x4, offset = 0x4, fixed_abs, tag = 'smem constant byte address 0x4 - core index']
  #allocation1 [shape = 'u32[144,128]{1,0:T(1,128)}', space=vmem, size = 0x12000, scoped, tag = 'internal scratch']
  %s0 = inlined_call_operand.hbm [shape: f32[2,8,32], index: 0, kind: input, shape index: {}]
  %s1 = inlined_call_operand.vmem [shape: f32[32,32], index: 1, kind: input, shape index: {}]
  %s2 = inlined_call_operand.hbm [shape: f32[32,96], index: 2, kind: input, shape index: {}]
  %s3 = inlined_call_operand.vmem [shape: f32[1,96], index: 3, kind: input, shape index: {}]
  %s4 = inlined_call_operand.hbm [shape: f32[4,32,32], index: 4, kind: input, shape index: {}]
  %s5 = inlined_call_operand.vmem [shape: f32[32,5], index: 5, kind: input, shape index: {}]
  %s6 = inlined_call_operand.vmem [shape: f32[1,5], index: 6, kind: input, shape index: {}]
  %s7 = inlined_call_operand.vmem [shape: f32[9,32], index: 7, kind: input, shape index: {}]
  %s8 = inlined_call_operand.hbm [shape: f32[2,8,32], index: 8, kind: output, shape index: {0}]
  %s9 = inlined_call_operand.vmem [shape: f32[2,8,5], index: 9, kind: output, shape index: {1}]
  %10 = xla_tuple %s8, %s9
  %s11 = sld [smem:[#allocation0]]
  $region85: #{tpu_custom_call.1} parent=0
    _
  %s13 = ssub.s32 1, %s11
  %s14 = scalar_select 0, %s13, %s11
  $region1: #{tpu_custom_call.1} parent=0
    #allocation2 [shape = 'u8[8192]{0}', space=vmem, size = 0x2000, scoped, tag = 'input window, operand 0']
    #allocation3 [shape = 's32[2]{0}', space=sflag, size = 0x8, scoped, tag = 'scoped memory for tpu_custom_call.1']
    #allocation4 [shape = 's32[2]{0}', space=sflag, size = 0x8, scoped, tag = 'scoped memory for tpu_custom_call.1']
    #allocation5 [shape = 'u8[16384]{0}', space=vmem, size = 0x4000, scoped, tag = 'input window, operand 2, single buffered']
    #allocation6 [shape = 's32[1]{0}', space=sflag, size = 0x4, scoped, tag = 'scoped memory for tpu_custom_call.1']
    #allocation7 [shape = 'u8[65536]{0}', space=vmem, size = 0x10000, scoped, tag = 'input window, operand 4, single buffered']
    #allocation8 [shape = 'u8[8192]{0}', space=vmem, size = 0x2000, scoped, tag = 'output window, operand 0']
    %15 = vsyncpa [#allocation3], 0
    %s16 = scalar_lea.sflag [#allocation3], 1
    %17 = vsyncpa %s16, 0
    %18 = vsyncpa [#allocation6], 0
    %19 = vsyncpa [#allocation4], 0
    %s20 = scalar_lea.sflag [#allocation4], 1
    %21 = vsyncpa %s20, 0
    loop: start=0, step=1, limit=4
    $region2: #{tpu_custom_call.1} parent=1 // loop_pre_header
      _
    $region3: #{tpu_custom_call.1} parent=1 // loop_header
      %s23 = sphi 0, %s27
      %p24 = scmp.ge.s32.totalorder %s23, 4
      %s33 = sphi 0, %s35
      %s36 = sphi 0, %s33
      %s37 = sphi 0, %s36
      %s53 = sphi 0, %s37
      %s57 = sphi 0, %s57
      %s59 = sphi 0, %s57
      %s60 = sphi 0, %s59
      %s74 = sphi 0, %s60
      %s78 = sphi 0, %s78
      %s80 = sphi 0, %s78
      %s81 = sphi 0, %s80
      %s95 = sphi 0, %s81
      %s99 = sphi 0, %s99
      %s101 = sphi 0, %s99
      %s102 = sphi 0, %s101
      %s116 = sphi 0, %s102
      %s120 = sphi 0, %s120
      %s122 = sphi 0, %s120
      %s123 = sphi 0, %s122
      %s137 = sphi 0, %s123
      %s141 = sphi 0, %s141
      %s143 = sphi 0, %s141
      %s144 = sphi 0, %s143
      %s158 = sphi 0, %s144
      %s162 = sphi 0, %s162
      %s164 = sphi 0, %s162
      %s165 = sphi 0, %s164
      %s179 = sphi 0, %s165
      %s183 = sphi 0, %s183
      %s185 = sphi 0, %s183
      %s186 = sphi 0, %s185
      %s200 = sphi 0, %s186
      %s206 = sphi 0, %s208
      %s209 = sphi 0, %s206
      %s210 = sphi 0, %s209
      %s226 = sphi 0, %s210
      %s232 = sphi 0, %s234
      %s235 = sphi 0, %s232
      %s236 = sphi 0, %s235
      %s252 = sphi 0, %s236
    $region4: #{tpu_custom_call.1} parent=1 // loop_header_branch
      %26 = sbr.rel (%p24) target = $region8
    $region5: #{tpu_custom_call.1} parent=1 // loop_body
      %s28 = ssub.s32 %s23, 1
      %s29 = ssub.s32 %s23, 2
      %s30 = sadd.s32 %s23, 1
      %s31 = ssub.s32 %s23, %s30
      %p32 = scmp.eq.s32.totalorder %s31, 0
      %s34 = sadd.s32 %s33, 1
      %s35 = scalar_select %p32, %s33, %s34
      %p38 = pneg %p32
      %p39 = scmp.eq.s32.totalorder %s23, 1
      %p40 = por %p38, %p39
      %p41 = scmp.ne.s32.totalorder %s33, %s36
      %p42 = scmp.eq.s32.totalorder %s23, 0
      %p43 = por %p41, %p42
      %p44 = scmp.ne.s32.totalorder %s33, %s36
      %p45 = scmp.eq.s32.totalorder %s28, 1
      %p46 = por %p44, %p45
      %p47 = scmp.ne.s32.totalorder %s36, %s37
      %p48 = scmp.eq.s32.totalorder %s28, 0
      %p49 = por %p47, %p48
      %p50 = scmp.ne.s32.totalorder %s36, %s37
      %p51 = scmp.eq.s32.totalorder %s29, 1
      %p52 = por %p50, %p51
      %p54 = scmp.ne.s32.totalorder %s37, %s53
      %p55 = scmp.eq.s32.totalorder %s29, 0
      %p56 = por %p54, %p55
      %s58 = sadd.s32 %s57, 1
      %p61 = scmp.eq.s32.totalorder %s23, 1
      %p62 = scmp.ne.s32.totalorder %s57, %s59
      %p63 = scmp.eq.s32.totalorder %s23, 0
      %p64 = por %p62, %p63
      %p65 = scmp.ne.s32.totalorder %s57, %s59
      %p66 = scmp.eq.s32.totalorder %s28, 1
      %p67 = por %p65, %p66
      %p68 = scmp.ne.s32.totalorder %s59, %s60
      %p69 = scmp.eq.s32.totalorder %s28, 0
      %p70 = por %p68, %p69
      %p71 = scmp.ne.s32.totalorder %s59, %s60
      %p72 = scmp.eq.s32.totalorder %s29, 1
      %p73 = por %p71, %p72
      %p75 = scmp.ne.s32.totalorder %s60, %s74
      %p76 = scmp.eq.s32.totalorder %s29, 0
      %p77 = por %p75, %p76
      %s79 = sadd.s32 %s78, 1
      %p82 = scmp.eq.s32.totalorder %s23, 1
      %p83 = scmp.ne.s32.totalorder %s78, %s80
      %p84 = scmp.eq.s32.totalorder %s23, 0
      %p85 = por %p83, %p84
      %p86 = scmp.ne.s32.totalorder %s78, %s80
      %p87 = scmp.eq.s32.totalorder %s28, 1
      %p88 = por %p86, %p87
      %p89 = scmp.ne.s32.totalorder %s80, %s81
      %p90 = scmp.eq.s32.totalorder %s28, 0
      %p91 = por %p89, %p90
      %p92 = scmp.ne.s32.totalorder %s80, %s81
      %p93 = scmp.eq.s32.totalorder %s29, 1
      %p94 = por %p92, %p93
      %p96 = scmp.ne.s32.totalorder %s81, %s95
      %p97 = scmp.eq.s32.totalorder %s29, 0
      %p98 = por %p96, %p97
      %s100 = sadd.s32 %s99, 1
      %p103 = scmp.eq.s32.totalorder %s23, 1
      %p104 = scmp.ne.s32.totalorder %s99, %s101
      %p105 = scmp.eq.s32.totalorder %s23, 0
      %p106 = por %p104, %p105
      %p107 = scmp.ne.s32.totalorder %s99, %s101
      %p108 = scmp.eq.s32.totalorder %s28, 1
      %p109 = por %p107, %p108
      %p110 = scmp.ne.s32.totalorder %s101, %s102
      %p111 = scmp.eq.s32.totalorder %s28, 0
      %p112 = por %p110, %p111
      %p113 = scmp.ne.s32.totalorder %s101, %s102
      %p114 = scmp.eq.s32.totalorder %s29, 1
      %p115 = por %p113, %p114
      %p117 = scmp.ne.s32.totalorder %s102, %s116
      %p118 = scmp.eq.s32.totalorder %s29, 0
      %p119 = por %p117, %p118
      %s121 = sadd.s32 %s120, 1
      %p124 = scmp.eq.s32.totalorder %s23, 1
      %p125 = scmp.ne.s32.totalorder %s120, %s122
      %p126 = scmp.eq.s32.totalorder %s23, 0
      %p127 = por %p125, %p126
      %p128 = scmp.ne.s32.totalorder %s120, %s122
      %p129 = scmp.eq.s32.totalorder %s28, 1
      %p130 = por %p128, %p129
      %p131 = scmp.ne.s32.totalorder %s122, %s123
      %p132 = scmp.eq.s32.totalorder %s28, 0
      %p133 = por %p131, %p132
      %p134 = scmp.ne.s32.totalorder %s122, %s123
      %p135 = scmp.eq.s32.totalorder %s29, 1
      %p136 = por %p134, %p135
      %p138 = scmp.ne.s32.totalorder %s123, %s137
      %p139 = scmp.eq.s32.totalorder %s29, 0
      %p140 = por %p138, %p139
      %s142 = sadd.s32 %s141, 1
      %p145 = scmp.eq.s32.totalorder %s23, 1
      %p146 = scmp.ne.s32.totalorder %s141, %s143
      %p147 = scmp.eq.s32.totalorder %s23, 0
      %p148 = por %p146, %p147
      %p149 = scmp.ne.s32.totalorder %s141, %s143
      %p150 = scmp.eq.s32.totalorder %s28, 1
      %p151 = por %p149, %p150
      %p152 = scmp.ne.s32.totalorder %s143, %s144
      %p153 = scmp.eq.s32.totalorder %s28, 0
      %p154 = por %p152, %p153
      %p155 = scmp.ne.s32.totalorder %s143, %s144
      %p156 = scmp.eq.s32.totalorder %s29, 1
      %p157 = por %p155, %p156
      %p159 = scmp.ne.s32.totalorder %s144, %s158
      %p160 = scmp.eq.s32.totalorder %s29, 0
      %p161 = por %p159, %p160
      %s163 = sadd.s32 %s162, 1
      %p166 = scmp.eq.s32.totalorder %s23, 1
      %p167 = scmp.ne.s32.totalorder %s162, %s164
      %p168 = scmp.eq.s32.totalorder %s23, 0
      %p169 = por %p167, %p168
      %p170 = scmp.ne.s32.totalorder %s162, %s164
      %p171 = scmp.eq.s32.totalorder %s28, 1
      %p172 = por %p170, %p171
      %p173 = scmp.ne.s32.totalorder %s164, %s165
      %p174 = scmp.eq.s32.totalorder %s28, 0
      %p175 = por %p173, %p174
      %p176 = scmp.ne.s32.totalorder %s164, %s165
      %p177 = scmp.eq.s32.totalorder %s29, 1
      %p178 = por %p176, %p177
      %p180 = scmp.ne.s32.totalorder %s165, %s179
      %p181 = scmp.eq.s32.totalorder %s29, 0
      %p182 = por %p180, %p181
      %s184 = sadd.s32 %s183, 1
      %p187 = scmp.eq.s32.totalorder %s23, 1
      %p188 = scmp.ne.s32.totalorder %s183, %s185
      %p189 = scmp.eq.s32.totalorder %s23, 0
      %p190 = por %p188, %p189
      %p191 = scmp.ne.s32.totalorder %s183, %s185
      %p192 = scmp.eq.s32.totalorder %s28, 1
      %p193 = por %p191, %p192
      %p194 = scmp.ne.s32.totalorder %s185, %s186
      %p195 = scmp.eq.s32.totalorder %s28, 0
      %p196 = por %p194, %p195
      %p197 = scmp.ne.s32.totalorder %s185, %s186
      %p198 = scmp.eq.s32.totalorder %s29, 1
      %p199 = por %p197, %p198
      %p201 = scmp.ne.s32.totalorder %s186, %s200
      %p202 = scmp.eq.s32.totalorder %s29, 0
      %p203 = por %p201, %p202
      %s204 = ssub.s32 %s23, %s30
      %p205 = scmp.eq.s32.totalorder %s204, 0
      %s207 = sadd.s32 %s206, 1
      %s208 = scalar_select %p205, %s206, %s207
      %p211 = pneg %p205
      %p212 = scmp.eq.s32.totalorder %s23, 1
      %p213 = por %p211, %p212
      %p214 = scmp.ne.s32.totalorder %s206, %s209
      %p215 = scmp.eq.s32.totalorder %s23, 0
      %p216 = por %p214, %p215
      %p217 = scmp.ne.s32.totalorder %s206, %s209
      %p218 = scmp.eq.s32.totalorder %s28, 1
      %p219 = por %p217, %p218
      %p220 = scmp.ne.s32.totalorder %s209, %s210
      %p221 = scmp.eq.s32.totalorder %s28, 0
      %p222 = por %p220, %p221
      %p223 = scmp.ne.s32.totalorder %s209, %s210
      %p224 = scmp.eq.s32.totalorder %s29, 1
      %p225 = por %p223, %p224
      %p227 = scmp.ne.s32.totalorder %s210, %s226
      %p228 = scmp.eq.s32.totalorder %s29, 0
      %p229 = por %p227, %p228
      %s230 = ssub.s32 %s23, %s30
      %p231 = scmp.eq.s32.totalorder %s230, 0
      %s233 = sadd.s32 %s232, 1
      %s234 = scalar_select %p231, %s232, %s233
      %p237 = pneg %p231
      %p238 = scmp.eq.s32.totalorder %s23, 1
      %p239 = por %p237, %p238
      %p240 = scmp.ne.s32.totalorder %s232, %s235
      %p241 = scmp.eq.s32.totalorder %s23, 0
      %p242 = por %p240, %p241
      %p243 = scmp.ne.s32.totalorder %s232, %s235
      %p244 = scmp.eq.s32.totalorder %s28, 1
      %p245 = por %p243, %p244
      %p246 = scmp.ne.s32.totalorder %s235, %s236
      %p247 = scmp.eq.s32.totalorder %s28, 0
      %p248 = por %p246, %p247
      %p249 = scmp.ne.s32.totalorder %s235, %s236
      %p250 = scmp.eq.s32.totalorder %s29, 1
      %p251 = por %p249, %p250
      %p253 = scmp.ne.s32.totalorder %s236, %s252
      %p254 = scmp.eq.s32.totalorder %s29, 0
      %p255 = por %p253, %p254
      %p256 = scmp.le.s32.totalorder 1, %s23
      %p257 = scmp.lt.s32.totalorder %s23, 3
      %p258 = pnand %p256, %p257
      %p259 = pneg %p258
      // Predicated region
      $region9: #{tpu_custom_call.1} parent=5 // pred_check
        _
      $region10: #{tpu_custom_call.1} parent=5 // pred_check_branch
        %261 = sbr.rel (%p258) target = $region12
      $region11: #{tpu_custom_call.1} parent=5 // pred_region
        %s262 = ssub.s32 %s23, 1
        // Predicated region
        $region13: #{tpu_custom_call.1} parent=11 // pred_check
          %p263 = pneg %p70
        $region14: #{tpu_custom_call.1} parent=11 // pred_check_branch
          %265 = sbr.rel (%p263) target = $region16
        $region15: #{tpu_custom_call.1} parent=11 // pred_region
          _
        $region16: #{tpu_custom_call.1} parent=11 // pred_fallthru
          _
        // Predicated region
        $region17: #{tpu_custom_call.1} parent=11 // pred_check
          %p266 = pneg %p91
        $region18: #{tpu_custom_call.1} parent=11 // pred_check_branch
          %268 = sbr.rel (%p266) target = $region20
        $region19: #{tpu_custom_call.1} parent=11 // pred_region
          %s270 = ssub.s32 512, 512
          %271 = vsyncadd [#allocation6], %s270
          %s272 = sshll.u32 [#allocation5], 4
          %s273 = int_to_ptr.vmem [resolvable:$true] %s272
          %278 = dma.hbm_to_vmem [thread:$0]  %s2, 512, %s273, [#allocation6], 128, 128, 8
        $region20: #{tpu_custom_call.1} parent=11 // pred_fallthru
          _
        // Predicated region
        $region21: #{tpu_custom_call.1} parent=11 // pred_check
          %p279 = pneg %p112
        $region22: #{tpu_custom_call.1} parent=11 // pred_check_branch
          %281 = sbr.rel (%p279) target = $region24
        $region23: #{tpu_custom_call.1} parent=11 // pred_region
          _
        $region24: #{tpu_custom_call.1} parent=11 // pred_fallthru
          _
        // Predicated region
        $region25: #{tpu_custom_call.1} parent=11 // pred_check
          %p282 = pneg %p133
        $region26: #{tpu_custom_call.1} parent=11 // pred_check_branch
          %284 = sbr.rel (%p282) target = $region28
        $region27: #{tpu_custom_call.1} parent=11 // pred_region
          %s286 = ssub.s32 2048, 2048
          %287 = vsyncadd [#allocation6], %s286
          %s288 = sshll.u32 [#allocation7], 4
          %s289 = int_to_ptr.vmem [resolvable:$true] %s288
          %294 = dma.hbm_to_vmem [thread:$0]  %s4, 2048, %s289, [#allocation6], 128, 128, 8
        $region28: #{tpu_custom_call.1} parent=11 // pred_fallthru
          _
        // Predicated region
        $region29: #{tpu_custom_call.1} parent=11 // pred_check
          %p295 = pneg %p154
        $region30: #{tpu_custom_call.1} parent=11 // pred_check_branch
          %297 = sbr.rel (%p295) target = $region32
        $region31: #{tpu_custom_call.1} parent=11 // pred_region
          _
        $region32: #{tpu_custom_call.1} parent=11 // pred_fallthru
          _
        // Predicated region
        $region33: #{tpu_custom_call.1} parent=11 // pred_check
          %p298 = pneg %p175
        $region34: #{tpu_custom_call.1} parent=11 // pred_check_branch
          %300 = sbr.rel (%p298) target = $region36
        $region35: #{tpu_custom_call.1} parent=11 // pred_region
          _
        $region36: #{tpu_custom_call.1} parent=11 // pred_fallthru
          _
        // Predicated region
        $region37: #{tpu_custom_call.1} parent=11 // pred_check
          %p301 = pneg %p196
        $region38: #{tpu_custom_call.1} parent=11 // pred_check_branch
          %303 = sbr.rel (%p301) target = $region40
        $region39: #{tpu_custom_call.1} parent=11 // pred_region
          _
        $region40: #{tpu_custom_call.1} parent=11 // pred_fallthru
          _
      $region12: #{tpu_custom_call.1} parent=5 // pred_fallthru
        _
      %p304 = scmp.lt.s32.totalorder %s23, 2
      // Predicated region
      $region41: #{tpu_custom_call.1} parent=5 // pred_check
        %p305 = pneg %p304
      $region42: #{tpu_custom_call.1} parent=5 // pred_check_branch
        %307 = sbr.rel (%p305) target = $region44
      $region43: #{tpu_custom_call.1} parent=5 // pred_region
        // Predicated region
        $region45: #{tpu_custom_call.1} parent=43 // pred_check
          %p308 = pneg %p43
        $region46: #{tpu_custom_call.1} parent=43 // pred_check_branch
          %310 = sbr.rel (%p308) target = $region48
        $region47: #{tpu_custom_call.1} parent=43 // pred_region
          %s311 = sand.u32 %s33, 1
          %s312 = scalar_lea.sflag [#allocation3], %s311
          %s313 = sand.u32 %s33, 1
          %s314 = smul.addr %s313, 8
          %s315 = scalar_lea.vmem [#allocation2], %s314
          %s317 = ssub.s32 128, 128
          %318 = vsyncadd %s312, %s317
          %s319 = smul.addr %s23, 128
          %s320 = scalar_lea.hbm %s0, %s319
          %s322 = sshll.u32 %s315, 4
          %s323 = int_to_ptr.vmem [resolvable:$true] %s322
          %325 = dma.hbm_to_vmem [thread:$0]  %s320, 128, %s323, %s312
        $region48: #{tpu_custom_call.1} parent=43 // pred_fallthru
          _
      $region44: #{tpu_custom_call.1} parent=5 // pred_fallthru
        _
      %p326 = scmp.le.s32.totalorder 1, %s23
      %p327 = scmp.lt.s32.totalorder %s23, 3
      %p328 = pnand %p326, %p327
      %p329 = pneg %p328
      // Predicated region
      $region49: #{tpu_custom_call.1} parent=5 // pred_check
        _
      $region50: #{tpu_custom_call.1} parent=5 // pred_check_branch
        %331 = sbr.rel (%p328) target = $region52
      $region51: #{tpu_custom_call.1} parent=5 // pred_region
        %s332 = ssub.s32 %s23, 1
        %s333 = sand.u32 %s36, 1
        %s334 = scalar_lea.sflag [#allocation3], %s333
        %s335 = sand.u32 %s36, 1
        %s336 = smul.addr %s335, 8
        %s337 = scalar_lea.vmem [#allocation2], %s336
        // Predicated region
        $region53: #{tpu_custom_call.1} parent=51 // pred_check
          %p338 = pneg %p49
        $region54: #{tpu_custom_call.1} parent=51 // pred_check_branch
          %340 = sbr.rel (%p338) target = $region56
        $region55: #{tpu_custom_call.1} parent=51 // pred_region
          %341 = dma.done %s334, 128
        $region56: #{tpu_custom_call.1} parent=51 // pred_fallthru
          _
        // Predicated region
        $region57: #{tpu_custom_call.1} parent=51 // pred_check
          %p342 = pneg %p91
        $region58: #{tpu_custom_call.1} parent=51 // pred_check_branch
          %344 = sbr.rel (%p342) target = $region60
        $region59: #{tpu_custom_call.1} parent=51 // pred_region
          %345 = dma.done [#allocation6], 512
        $region60: #{tpu_custom_call.1} parent=51 // pred_fallthru
          _
        // Predicated region
        $region61: #{tpu_custom_call.1} parent=51 // pred_check
          %p346 = pneg %p133
        $region62: #{tpu_custom_call.1} parent=51 // pred_check_branch
          %348 = sbr.rel (%p346) target = $region64
        $region63: #{tpu_custom_call.1} parent=51 // pred_region
          %349 = dma.done [#allocation6], 2048
        $region64: #{tpu_custom_call.1} parent=51 // pred_fallthru
          _
        %s350 = sand.u32 %s36, 1
        %s351 = scalar_lea.sflag [#allocation3], %s350
        %s352 = sand.u32 %s36, 1
        %s353 = smul.addr %s352, 8
        %s354 = scalar_lea.vmem [#allocation2], %s353
        %p355 = pneg %p49
        %p356 = pneg %p46
        %p357 = pneg %p70
        %p358 = pneg %p67
        %p359 = pneg %p91
        %p360 = pneg %p88
        %p361 = pneg %p112
        %p362 = pneg %p109
        %p363 = pneg %p133
        %p364 = pneg %p130
        %p365 = pneg %p154
        %p366 = pneg %p151
        %p367 = pneg %p175
        %p368 = pneg %p172
        %p369 = pneg %p196
        %p370 = pneg %p193
        %p371 = pneg %p222
        %p372 = pneg %p219
        %s373 = sand.u32 %s209, 1
        %s374 = scalar_lea.sflag [#allocation4], %s373
        %s375 = sand.u32 %s209, 1
        %s376 = smul.addr %s375, 8
        %s377 = scalar_lea.vmem [#allocation8], %s376
        %p378 = pneg %p248
        %p379 = pneg %p245
        %p380 = scmp.lt.s32.totalorder %s28, 1
        %s381 = scalar_select %p380, %s28, 1
        %s382 = smul.addr %s381, 8
        %s383 = scalar_lea.vmem %s9, %s382
        %p384 = scmp.lt.s32.totalorder %s28, 1
        %s385 = scalar_select %p384, %s28, 1
        %s386 = smul.addr %s385, 8
        %s387 = scalar_lea.vmem %s9, %s386
        %v388 = vld [vmem:[%s7] sm:$0xff]
        %v389 = vld [vmem:[%s7 + $0x8] sm:$0x1]
        %v390 = vld [vmem:[%s337] sm:$0xff]
        %v391 = vld [vmem:[%s1] sm:$0xff]
        %v392 = vld [vmem:[%s1 + $0x8] sm:$0xff]
        %v393 = vld [vmem:[%s1 + $0x10] sm:$0xff]
        %v394 = vld [vmem:[%s1 + $0x18] sm:$0xff]
        %v395 = vlaneseq
        %v396 = vshrl.u32 %v395, 7
        %v397 = vsub.s32 0, %v396
        %v398 = vrot.slane %v388, %v397
        %vm399 = vcmask 261120
        %v401 = vsel %vm399, %v390, 0
        %403 = vmatprep.subr.mxu0 0.0
        %404 = vmatpush1.msra.mxu0 %v391
        %405 = vmatprep.subr.mxu0 0.0
        %406 = vmatpush1.msra.mxu0 %v392
        %407 = vmatprep.subr.mxu0 0.0
        %408 = vmatpush1.msra.mxu0 %v393
        %409 = vmatprep.subr.mxu0 0.0
        %410 = vmatpush1.msra.mxu0 %v394
        %411 = vmatprep.subr.mxu0 0.0
        %412 = vmatpush1.msra.mxu0 0.0
        %413 = vmatprep.subr.mxu0 0.0
        %414 = vmatpush1.msra.mxu0 0.0
        %415 = vmatprep.subr.mxu0 0.0
        %416 = vmatpush1.msra.mxu0 0.0
        %417 = vmatprep.subr.mxu0 0.0
        %418 = vmatpush1.msra.mxu0 0.0
        %419 = vmatprep.subr.mxu0 0.0
        %420 = vmatpush1.msra.mxu0 0.0
        %421 = vmatprep.subr.mxu0 0.0
        %422 = vmatpush1.msra.mxu0 0.0
        %423 = vmatprep.subr.mxu0 0.0
        %424 = vmatpush1.msra.mxu0 0.0
        %425 = vmatprep.subr.mxu0 0.0
        %426 = vmatpush1.msra.mxu0 0.0
        %427 = vmatprep.subr.mxu0 0.0
        %428 = vmatpush1.msra.mxu0 0.0
        %429 = vmatprep.subr.mxu0 0.0
        %430 = vmatpush1.msra.mxu0 0.0
        %431 = vmatprep.subr.mxu0 0.0
        %432 = vmatpush1.msra.mxu0 0.0
        %433 = vmatprep.subr.mxu0 0.0
        %434 = vmatpush1.msra.mxu0 0.0
        %435 = vmatprep.subr.mxu0 0.0
        %436 = vmatpush1.msra.mxu0 0.0
        %437 = vmatprep.subr.mxu0 0.0
        %438 = vmatpush1.msra.mxu0 0.0
        %439 = vmatprep.subr.mxu0 0.0
        %440 = vmatpush1.msra.mxu0 0.0
        %441 = vmatprep.subr.mxu0 0.0
        %442 = vmatpush1.msra.mxu0 0.0
        %443 = vmatprep.subr.mxu0 0.0
        %444 = vmatpush1.msra.mxu0 0.0
        %445 = vmatprep.subr.mxu0 0.0
        %446 = vmatpush1.msra.mxu0 0.0
        %447 = vmatprep.subr.mxu0 0.0
        %448 = vmatpush1.msra.mxu0 0.0
        %449 = vmatprep.subr.mxu0 0.0
        %450 = vmatpush1.msra.mxu0 0.0
        %451 = vmatprep.subr.mxu0 0.0
        %452 = vmatpush1.msra.mxu0 0.0
        %453 = vmatprep.subr.mxu0 0.0
        %454 = vmatpush1.msra.mxu0 0.0
        %455 = vmatprep.subr.mxu0 0.0
        %456 = vmatpush1.msra.mxu0 0.0
        %457 = vmatprep.subr.mxu0 0.0
        %458 = vmatpush1.msra.mxu0 0.0
        %459 = vmatprep.subr.mxu0 0.0
        %460 = vmatpush1.msra.mxu0 0.0
        %461 = vmatprep.subr.mxu0 0.0
        %462 = vmatpush1.msra.mxu0 0.0
        %463 = vmatprep.subr.mxu0 0.0
        %464 = vmatpush1.msra.mxu0 0.0
        %465 = vmatprep.subr.mxu0 0.0
        %466 = vmatpush1.msra.mxu0 0.0
        %467 = vmatprep.mubr.f32.mxu0 0.0
        %468 = vmatmul.mubr.f32.gmra.mrb[0].mxu0 %v401
        %v469 = vpop.f32.mrb[0].mxu0
        %v470 = vadd.f32 %v398, %v469
        %v471 = vpop.f32.mrb[0].mxu0
        %472 = vdwg.mxu0
        %v473 = vld [vmem:[#allocation5] sm:$0xff]
        %v474 = vld [vmem:[#allocation5 + $0x8] sm:$0xff]
        %v475 = vld [vmem:[#allocation5 + $0x10] sm:$0xff]
        %v476 = vld [vmem:[#allocation5 + $0x18] sm:$0xff]
        %v477 = vld [vmem:[%s3] sm:$0x1]
        %v479 = vlaneseq
        %v480 = vshrl.u32 %v479, 7
        %v481 = vsub.s32 0, %v480
        %v482 = vrot.slane %v477, %v481
        %v485 = vsel %vm399, %v470, 0
        %487 = vmatprep.subr.mxu0 0.0
        %488 = vmatpush1.msra.mxu0 %v473
        %489 = vmatprep.subr.mxu0 0.0
        %490 = vmatpush1.msra.mxu0 %v474
        %491 = vmatprep.subr.mxu0 0.0
        %492 = vmatpush1.msra.mxu0 %v475
        %493 = vmatprep.subr.mxu0 0.0
        %494 = vmatpush1.msra.mxu0 %v476
        %495 = vmatprep.subr.mxu0 0.0
        %496 = vmatpush1.msra.mxu0 0.0
        %497 = vmatprep.subr.mxu0 0.0
        %498 = vmatpush1.msra.mxu0 0.0
        %499 = vmatprep.subr.mxu0 0.0
        %500 = vmatpush1.msra.mxu0 0.0
        %501 = vmatprep.subr.mxu0 0.0
        %502 = vmatpush1.msra.mxu0 0.0
        %503 = vmatprep.subr.mxu0 0.0
        %504 = vmatpush1.msra.mxu0 0.0
        %505 = vmatprep.subr.mxu0 0.0
        %506 = vmatpush1.msra.mxu0 0.0
        %507 = vmatprep.subr.mxu0 0.0
        %508 = vmatpush1.msra.mxu0 0.0
        %509 = vmatprep.subr.mxu0 0.0
        %510 = vmatpush1.msra.mxu0 0.0
        %511 = vmatprep.subr.mxu0 0.0
        %512 = vmatpush1.msra.mxu0 0.0
        %513 = vmatprep.subr.mxu0 0.0
        %514 = vmatpush1.msra.mxu0 0.0
        %515 = vmatprep.subr.mxu0 0.0
        %516 = vmatpush1.msra.mxu0 0.0
        %517 = vmatprep.subr.mxu0 0.0
        %518 = vmatpush1.msra.mxu0 0.0
        %519 = vmatprep.subr.mxu0 0.0
        %520 = vmatpush1.msra.mxu0 0.0
        %521 = vmatprep.subr.mxu0 0.0
        %522 = vmatpush1.msra.mxu0 0.0
        %523 = vmatprep.subr.mxu0 0.0
        %524 = vmatpush1.msra.mxu0 0.0
        %525 = vmatprep.subr.mxu0 0.0
        %526 = vmatpush1.msra.mxu0 0.0
        %527 = vmatprep.subr.mxu0 0.0
        %528 = vmatpush1.msra.mxu0 0.0
        %529 = vmatprep.subr.mxu0 0.0
        %530 = vmatpush1.msra.mxu0 0.0
        %531 = vmatprep.subr.mxu0 0.0
        %532 = vmatpush1.msra.mxu0 0.0
        %533 = vmatprep.subr.mxu0 0.0
        %534 = vmatpush1.msra.mxu0 0.0
        %535 = vmatprep.subr.mxu0 0.0
        %536 = vmatpush1.msra.mxu0 0.0
        %537 = vmatprep.subr.mxu0 0.0
        %538 = vmatpush1.msra.mxu0 0.0
        %539 = vmatprep.subr.mxu0 0.0
        %540 = vmatpush1.msra.mxu0 0.0
        %541 = vmatprep.subr.mxu0 0.0
        %542 = vmatpush1.msra.mxu0 0.0
        %543 = vmatprep.subr.mxu0 0.0
        %544 = vmatpush1.msra.mxu0 0.0
        %545 = vmatprep.subr.mxu0 0.0
        %546 = vmatpush1.msra.mxu0 0.0
        %547 = vmatprep.subr.mxu0 0.0
        %548 = vmatpush1.msra.mxu0 0.0
        %549 = vmatprep.subr.mxu0 0.0
        %550 = vmatpush1.msra.mxu0 0.0
        %551 = vmatprep.mubr.f32.mxu0 0.0
        %552 = vmatmul.mubr.f32.gmra.mrb[0].mxu0 %v485
        %v553 = vpop.f32.mrb[0].mxu0
        %v554 = vadd.f32 %v482, %v553
        %v555 = vpop.f32.mrb[0].mxu0
        %556 = vdwg.mxu0
        %558 = vrot.lane.b32.xlu0 %v554, 96
        %v559 = vpop.permute.xlu0 %558
        %vm560 = vcmask 64512
        %v561 = vsel %vm560, %v554, 0
        %v563 = vsel %vm560, %v559, 0
        %565 = vmatprep.subr.mxu0 0.0
        %566 = vmatpush1.xpose.msra.mxu0 %v563
        %567 = vmatprep.subr.mxu0 0.0
        %568 = vmatpush1.xpose.msra.mxu0 0.0
        %569 = vmatprep.subr.mxu0 0.0
        %570 = vmatpush1.xpose.msra.mxu0 0.0
        %571 = vmatprep.subr.mxu0 0.0
        %572 = vmatpush1.xpose.msra.mxu0 0.0
        %573 = vmatprep.subr.mxu0 0.0
        %574 = vmatpush1.xpose.msra.mxu0 0.0
        %575 = vmatprep.subr.mxu0 0.0
        %576 = vmatpush1.xpose.msra.mxu0 0.0
        %577 = vmatprep.subr.mxu0 0.0
        %578 = vmatpush1.xpose.msra.mxu0 0.0
        %579 = vmatprep.subr.mxu0 0.0
        %580 = vmatpush1.xpose.msra.mxu0 0.0
        %581 = vmatprep.subr.mxu0 0.0
        %582 = vmatpush1.xpose.msra.mxu0 0.0
        %583 = vmatprep.subr.mxu0 0.0
        %584 = vmatpush1.xpose.msra.mxu0 0.0
        %585 = vmatprep.subr.mxu0 0.0
        %586 = vmatpush1.xpose.msra.mxu0 0.0
        %587 = vmatprep.subr.mxu0 0.0
        %588 = vmatpush1.xpose.msra.mxu0 0.0
        %589 = vmatprep.subr.mxu0 0.0
        %590 = vmatpush1.xpose.msra.mxu0 0.0
        %591 = vmatprep.subr.mxu0 0.0
        %592 = vmatpush1.xpose.msra.mxu0 0.0
        %593 = vmatprep.subr.mxu0 0.0
        %594 = vmatpush1.xpose.msra.mxu0 0.0
        %595 = vmatprep.subr.mxu0 0.0
        %596 = vmatpush1.xpose.msra.mxu0 0.0
        %597 = vmatprep.subr.mxu0 0.0
        %598 = vmatpush1.xpose.msra.mxu0 0.0
        %599 = vmatprep.subr.mxu0 0.0
        %600 = vmatpush1.xpose.msra.mxu0 0.0
        %601 = vmatprep.subr.mxu0 0.0
        %602 = vmatpush1.xpose.msra.mxu0 0.0
        %603 = vmatprep.subr.mxu0 0.0
        %604 = vmatpush1.xpose.msra.mxu0 0.0
        %605 = vmatprep.subr.mxu0 0.0
        %606 = vmatpush1.xpose.msra.mxu0 0.0
        %607 = vmatprep.subr.mxu0 0.0
        %608 = vmatpush1.xpose.msra.mxu0 0.0
        %609 = vmatprep.subr.mxu0 0.0
        %610 = vmatpush1.xpose.msra.mxu0 0.0
        %611 = vmatprep.subr.mxu0 0.0
        %612 = vmatpush1.xpose.msra.mxu0 0.0
        %613 = vmatprep.subr.mxu0 0.0
        %614 = vmatpush1.xpose.msra.mxu0 0.0
        %615 = vmatprep.subr.mxu0 0.0
        %616 = vmatpush1.xpose.msra.mxu0 0.0
        %617 = vmatprep.subr.mxu0 0.0
        %618 = vmatpush1.xpose.msra.mxu0 0.0
        %619 = vmatprep.subr.mxu0 0.0
        %620 = vmatpush1.xpose.msra.mxu0 0.0
        %621 = vmatprep.subr.mxu0 0.0
        %622 = vmatpush1.xpose.msra.mxu0 0.0
        %623 = vmatprep.subr.mxu0 0.0
        %624 = vmatpush1.xpose.msra.mxu0 0.0
        %625 = vmatprep.subr.mxu0 0.0
        %626 = vmatpush1.xpose.msra.mxu0 0.0
        %627 = vmatprep.subr.mxu0 0.0
        %628 = vmatpush1.xpose.msra.mxu0 0.0
        %629 = vmatprep.mubr.f32.mxu0 0.0
        %630 = vmatmul.mubr.f32.gmra.mrb[0].mxu0 %v561
        %v631 = vpop.f32.mrb[0].mxu0
        %v632 = vadd.f32 0.0, %v631
        %v633 = vpop.f32.mrb[0].mxu0
        %634 = vdwg.mxu0
        %v635 = vsel %vm560, %v632, -inf
        %636 = vmax.xlane.f32.xlu0 %v635
        %v637 = vpop.xlane.xlu0 %636
        %v638 = vsub.f32 %v632, %v637
        %v639 = vmul.f32 %v638, 1.442695
        %v640 = vpow.pop %v639
        %v641 = vsel %vm560, %v640, 0.0
        %642 = vadd.xlane.f32.xlu0 %v641
        %v643 = vpop.xlane.xlu0 %642
        %v644 = vrcp.pop %v643
        %v645 = vmul.f32 %v640, %v644
        %646 = vrot.lane.b32.xlu0 %v554, 64
        %v647 = vpop.permute.xlu0 %646
        %v650 = vsel %vm560, %v645, 0
        %652 = vmatprep.subr.mxu0 0.0
        %653 = vmatpush1.msra.mxu0 %v647
        %654 = vmatprep.subr.mxu0 0.0
        %655 = vmatpush1.msra.mxu0 0.0
        %656 = vmatprep.subr.mxu0 0.0
        %657 = vmatpush1.msra.mxu0 0.0
        %658 = vmatprep.subr.mxu0 0.0
        %659 = vmatpush1.msra.mxu0 0.0
        %660 = vmatprep.subr.mxu0 0.0
        %661 = vmatpush1.msra.mxu0 0.0
        %662 = vmatprep.subr.mxu0 0.0
        %663 = vmatpush1.msra.mxu0 0.0
        %664 = vmatprep.subr.mxu0 0.0
        %665 = vmatpush1.msra.mxu0 0.0
        %666 = vmatprep.subr.mxu0 0.0
        %667 = vmatpush1.msra.mxu0 0.0
        %668 = vmatprep.subr.mxu0 0.0
        %669 = vmatpush1.msra.mxu0 0.0
        %670 = vmatprep.subr.mxu0 0.0
        %671 = vmatpush1.msra.mxu0 0.0
        %672 = vmatprep.subr.mxu0 0.0
        %673 = vmatpush1.msra.mxu0 0.0
        %674 = vmatprep.subr.mxu0 0.0
        %675 = vmatpush1.msra.mxu0 0.0
        %676 = vmatprep.subr.mxu0 0.0
        %677 = vmatpush1.msra.mxu0 0.0
        %678 = vmatprep.subr.mxu0 0.0
        %679 = vmatpush1.msra.mxu0 0.0
        %680 = vmatprep.subr.mxu0 0.0
        %681 = vmatpush1.msra.mxu0 0.0
        %682 = vmatprep.subr.mxu0 0.0
        %683 = vmatpush1.msra.mxu0 0.0
        %684 = vmatprep.subr.mxu0 0.0
        %685 = vmatpush1.msra.mxu0 0.0
        %686 = vmatprep.subr.mxu0 0.0
        %687 = vmatpush1.msra.mxu0 0.0
        %688 = vmatprep.subr.mxu0 0.0
        %689 = vmatpush1.msra.mxu0 0.0
        %690 = vmatprep.subr.mxu0 0.0
        %691 = vmatpush1.msra.mxu0 0.0
        %692 = vmatprep.subr.mxu0 0.0
        %693 = vmatpush1.msra.mxu0 0.0
        %694 = vmatprep.subr.mxu0 0.0
        %695 = vmatpush1.msra.mxu0 0.0
        %696 = vmatprep.subr.mxu0 0.0
        %697 = vmatpush1.msra.mxu0 0.0
        %698 = vmatprep.subr.mxu0 0.0
        %699 = vmatpush1.msra.mxu0 0.0
        %700 = vmatprep.subr.mxu0 0.0
        %701 = vmatpush1.msra.mxu0 0.0
        %702 = vmatprep.subr.mxu0 0.0
        %703 = vmatpush1.msra.mxu0 0.0
        %704 = vmatprep.subr.mxu0 0.0
        %705 = vmatpush1.msra.mxu0 0.0
        %706 = vmatprep.subr.mxu0 0.0
        %707 = vmatpush1.msra.mxu0 0.0
        %708 = vmatprep.subr.mxu0 0.0
        %709 = vmatpush1.msra.mxu0 0.0
        %710 = vmatprep.subr.mxu0 0.0
        %711 = vmatpush1.msra.mxu0 0.0
        %712 = vmatprep.subr.mxu0 0.0
        %713 = vmatpush1.msra.mxu0 0.0
        %714 = vmatprep.subr.mxu0 0.0
        %715 = vmatpush1.msra.mxu0 0.0
        %716 = vmatprep.mubr.f32.mxu0 0.0
        %717 = vmatmul.mubr.f32.gmra.mrb[0].mxu0 %v650
        %v718 = vpop.f32.mrb[0].mxu0
        %v719 = vadd.f32 0.0, %v718
        %v720 = vpop.f32.mrb[0].mxu0
        %721 = vdwg.mxu0
        %722 = vrot.lane.b32.xlu0 %v554, 120
        %v723 = vpop.permute.xlu0 %722
        %724 = vrot.lane.b32.xlu0 %v554, 88
        %v725 = vpop.permute.xlu0 %724
        %v726 = vsel %vm560, %v723, 0
        %v728 = vsel %vm560, %v725, 0
        %730 = vmatprep.subr.mxu0 0.0
        %731 = vmatpush1.xpose.msra.mxu0 %v728
        %732 = vmatprep.subr.mxu0 0.0
        %733 = vmatpush1.xpose.msra.mxu0 0.0
        %734 = vmatprep.subr.mxu0 0.0
        %735 = vmatpush1.xpose.msra.mxu0 0.0
        %736 = vmatprep.subr.mxu0 0.0
        %737 = vmatpush1.xpose.msra.mxu0 0.0
        %738 = vmatprep.subr.mxu0 0.0
        %739 = vmatpush1.xpose.msra.mxu0 0.0
        %740 = vmatprep.subr.mxu0 0.0
        %741 = vmatpush1.xpose.msra.mxu0 0.0
        %742 = vmatprep.subr.mxu0 0.0
        %743 = vmatpush1.xpose.msra.mxu0 0.0
        %744 = vmatprep.subr.mxu0 0.0
        %745 = vmatpush1.xpose.msra.mxu0 0.0
        %746 = vmatprep.subr.mxu0 0.0
        %747 = vmatpush1.xpose.msra.mxu0 0.0
        %748 = vmatprep.subr.mxu0 0.0
        %749 = vmatpush1.xpose.msra.mxu0 0.0
        %750 = vmatprep.subr.mxu0 0.0
        %751 = vmatpush1.xpose.msra.mxu0 0.0
        %752 = vmatprep.subr.mxu0 0.0
        %753 = vmatpush1.xpose.msra.mxu0 0.0
        %754 = vmatprep.subr.mxu0 0.0
        %755 = vmatpush1.xpose.msra.mxu0 0.0
        %756 = vmatprep.subr.mxu0 0.0
        %757 = vmatpush1.xpose.msra.mxu0 0.0
        %758 = vmatprep.subr.mxu0 0.0
        %759 = vmatpush1.xpose.msra.mxu0 0.0
        %760 = vmatprep.subr.mxu0 0.0
        %761 = vmatpush1.xpose.msra.mxu0 0.0
        %762 = vmatprep.subr.mxu0 0.0
        %763 = vmatpush1.xpose.msra.mxu0 0.0
        %764 = vmatprep.subr.mxu0 0.0
        %765 = vmatpush1.xpose.msra.mxu0 0.0
        %766 = vmatprep.subr.mxu0 0.0
        %767 = vmatpush1.xpose.msra.mxu0 0.0
        %768 = vmatprep.subr.mxu0 0.0
        %769 = vmatpush1.xpose.msra.mxu0 0.0
        %770 = vmatprep.subr.mxu0 0.0
        %771 = vmatpush1.xpose.msra.mxu0 0.0
        %772 = vmatprep.subr.mxu0 0.0
        %773 = vmatpush1.xpose.msra.mxu0 0.0
        %774 = vmatprep.subr.mxu0 0.0
        %775 = vmatpush1.xpose.msra.mxu0 0.0
        %776 = vmatprep.subr.mxu0 0.0
        %777 = vmatpush1.xpose.msra.mxu0 0.0
        %778 = vmatprep.subr.mxu0 0.0
        %779 = vmatpush1.xpose.msra.mxu0 0.0
        %780 = vmatprep.subr.mxu0 0.0
        %781 = vmatpush1.xpose.msra.mxu0 0.0
        %782 = vmatprep.subr.mxu0 0.0
        %783 = vmatpush1.xpose.msra.mxu0 0.0
        %784 = vmatprep.subr.mxu0 0.0
        %785 = vmatpush1.xpose.msra.mxu0 0.0
        %786 = vmatprep.subr.mxu0 0.0
        %787 = vmatpush1.xpose.msra.mxu0 0.0
        %788 = vmatprep.subr.mxu0 0.0
        %789 = vmatpush1.xpose.msra.mxu0 0.0
        %790 = vmatprep.subr.mxu0 0.0
        %791 = vmatpush1.xpose.msra.mxu0 0.0
        %792 = vmatprep.subr.mxu0 0.0
        %793 = vmatpush1.xpose.msra.mxu0 0.0
        %794 = vmatprep.mubr.f32.mxu0 0.0
        %795 = vmatmul.mubr.f32.gmra.mrb[0].mxu0 %v726
        %v796 = vpop.f32.mrb[0].mxu0
        %v797 = vadd.f32 0.0, %v796
        %v798 = vpop.f32.mrb[0].mxu0
        %799 = vdwg.mxu0
        %v800 = vsel %vm560, %v797, -inf
        %801 = vmax.xlane.f32.xlu0 %v800
        %v802 = vpop.xlane.xlu0 %801
        %v803 = vsub.f32 %v797, %v802
        %v804 = vmul.f32 %v803, 1.442695
        %v805 = vpow.pop %v804
        %v806 = vsel %vm560, %v805, 0.0
        %807 = vadd.xlane.f32.xlu0 %v806
        %v808 = vpop.xlane.xlu0 %807
        %v809 = vrcp.pop %v808
        %v810 = vmul.f32 %v805, %v809
        %811 = vrot.lane.b32.xlu0 %v554, 56
        %v812 = vpop.permute.xlu0 %811
        %v815 = vsel %vm560, %v810, 0
        %817 = vmatprep.subr.mxu0 0.0
        %818 = vmatpush1.msra.mxu0 %v812
        %819 = vmatprep.subr.mxu0 0.0
        %820 = vmatpush1.msra.mxu0 0.0
        %821 = vmatprep.subr.mxu0 0.0
        %822 = vmatpush1.msra.mxu0 0.0
        %823 = vmatprep.subr.mxu0 0.0
        %824 = vmatpush1.msra.mxu0 0.0
        %825 = vmatprep.subr.mxu0 0.0
        %826 = vmatpush1.msra.mxu0 0.0
        %827 = vmatprep.subr.mxu0 0.0
        %828 = vmatpush1.msra.mxu0 0.0
        %829 = vmatprep.subr.mxu0 0.0
        %830 = vmatpush1.msra.mxu0 0.0
        %831 = vmatprep.subr.mxu0 0.0
        %832 = vmatpush1.msra.mxu0 0.0
        %833 = vmatprep.subr.mxu0 0.0
        %834 = vmatpush1.msra.mxu0 0.0
        %835 = vmatprep.subr.mxu0 0.0
        %836 = vmatpush1.msra.mxu0 0.0
        %837 = vmatprep.subr.mxu0 0.0
        %838 = vmatpush1.msra.mxu0 0.0
        %839 = vmatprep.subr.mxu0 0.0
        %840 = vmatpush1.msra.mxu0 0.0
        %841 = vmatprep.subr.mxu0 0.0
        %842 = vmatpush1.msra.mxu0 0.0
        %843 = vmatprep.subr.mxu0 0.0
        %844 = vmatpush1.msra.mxu0 0.0
        %845 = vmatprep.subr.mxu0 0.0
        %846 = vmatpush1.msra.mxu0 0.0
        %847 = vmatprep.subr.mxu0 0.0
        %848 = vmatpush1.msra.mxu0 0.0
        %849 = vmatprep.subr.mxu0 0.0
        %850 = vmatpush1.msra.mxu0 0.0
        %851 = vmatprep.subr.mxu0 0.0
        %852 = vmatpush1.msra.mxu0 0.0
        %853 = vmatprep.subr.mxu0 0.0
        %854 = vmatpush1.msra.mxu0 0.0
        %855 = vmatprep.subr.mxu0 0.0
        %856 = vmatpush1.msra.mxu0 0.0
        %857 = vmatprep.subr.mxu0 0.0
        %858 = vmatpush1.msra.mxu0 0.0
        %859 = vmatprep.subr.mxu0 0.0
        %860 = vmatpush1.msra.mxu0 0.0
        %861 = vmatprep.subr.mxu0 0.0
        %862 = vmatpush1.msra.mxu0 0.0
        %863 = vmatprep.subr.mxu0 0.0
        %864 = vmatpush1.msra.mxu0 0.0
        %865 = vmatprep.subr.mxu0 0.0
        %866 = vmatpush1.msra.mxu0 0.0
        %867 = vmatprep.subr.mxu0 0.0
        %868 = vmatpush1.msra.mxu0 0.0
        %869 = vmatprep.subr.mxu0 0.0
        %870 = vmatpush1.msra.mxu0 0.0
        %871 = vmatprep.subr.mxu0 0.0
        %872 = vmatpush1.msra.mxu0 0.0
        %873 = vmatprep.subr.mxu0 0.0
        %874 = vmatpush1.msra.mxu0 0.0
        %875 = vmatprep.subr.mxu0 0.0
        %876 = vmatpush1.msra.mxu0 0.0
        %877 = vmatprep.subr.mxu0 0.0
        %878 = vmatpush1.msra.mxu0 0.0
        %879 = vmatprep.subr.mxu0 0.0
        %880 = vmatpush1.msra.mxu0 0.0
        %881 = vmatprep.mubr.f32.mxu0 0.0
        %882 = vmatmul.mubr.f32.gmra.mrb[0].mxu0 %v815
        %v883 = vpop.f32.mrb[0].mxu0
        %v884 = vadd.f32 0.0, %v883
        %v885 = vpop.f32.mrb[0].mxu0
        %886 = vdwg.mxu0
        %887 = vrot.lane.b32.xlu0 %v554, 112
        %v888 = vpop.permute.xlu0 %887
        %889 = vrot.lane.b32.xlu0 %v554, 80
        %v890 = vpop.permute.xlu0 %889
        %v891 = vsel %vm560, %v888, 0
        %v893 = vsel %vm560, %v890, 0
        %895 = vmatprep.subr.mxu0 0.0
        %896 = vmatpush1.xpose.msra.mxu0 %v893
        %897 = vmatprep.subr.mxu0 0.0
        %898 = vmatpush1.xpose.msra.mxu0 0.0
        %899 = vmatprep.subr.mxu0 0.0
        %900 = vmatpush1.xpose.msra.mxu0 0.0
        %901 = vmatprep.subr.mxu0 0.0
        %902 = vmatpush1.xpose.msra.mxu0 0.0
        %903 = vmatprep.subr.mxu0 0.0
        %904 = vmatpush1.xpose.msra.mxu0 0.0
        %905 = vmatprep.subr.mxu0 0.0
        %906 = vmatpush1.xpose.msra.mxu0 0.0
        %907 = vmatprep.subr.mxu0 0.0
        %908 = vmatpush1.xpose.msra.mxu0 0.0
        %909 = vmatprep.subr.mxu0 0.0
        %910 = vmatpush1.xpose.msra.mxu0 0.0
        %911 = vmatprep.subr.mxu0 0.0
        %912 = vmatpush1.xpose.msra.mxu0 0.0
        %913 = vmatprep.subr.mxu0 0.0
        %914 = vmatpush1.xpose.msra.mxu0 0.0
        %915 = vmatprep.subr.mxu0 0.0
        %916 = vmatpush1.xpose.msra.mxu0 0.0
        %917 = vmatprep.subr.mxu0 0.0
        %918 = vmatpush1.xpose.msra.mxu0 0.0
        %919 = vmatprep.subr.mxu0 0.0
        %920 = vmatpush1.xpose.msra.mxu0 0.0
        %921 = vmatprep.subr.mxu0 0.0
        %922 = vmatpush1.xpose.msra.mxu0 0.0
        %923 = vmatprep.subr.mxu0 0.0
        %924 = vmatpush1.xpose.msra.mxu0 0.0
        %925 = vmatprep.subr.mxu0 0.0
        %926 = vmatpush1.xpose.msra.mxu0 0.0
        %927 = vmatprep.subr.mxu0 0.0
        %928 = vmatpush1.xpose.msra.mxu0 0.0
        %929 = vmatprep.subr.mxu0 0.0
        %930 = vmatpush1.xpose.msra.mxu0 0.0
        %931 = vmatprep.subr.mxu0 0.0
        %932 = vmatpush1.xpose.msra.mxu0 0.0
        %933 = vmatprep.subr.mxu0 0.0
        %934 = vmatpush1.xpose.msra.mxu0 0.0
        %935 = vmatprep.subr.mxu0 0.0
        %936 = vmatpush1.xpose.msra.mxu0 0.0
        %937 = vmatprep.subr.mxu0 0.0
        %938 = vmatpush1.xpose.msra.mxu0 0.0
        %939 = vmatprep.subr.mxu0 0.0
        %940 = vmatpush1.xpose.msra.mxu0 0.0
        %941 = vmatprep.subr.mxu0 0.0
        %942 = vmatpush1.xpose.msra.mxu0 0.0
        %943 = vmatprep.subr.mxu0 0.0
        %944 = vmatpush1.xpose.msra.mxu0 0.0
        %945 = vmatprep.subr.mxu0 0.0
        %946 = vmatpush1.xpose.msra.mxu0 0.0
        %947 = vmatprep.subr.mxu0 0.0
        %948 = vmatpush1.xpose.msra.mxu0 0.0
        %949 = vmatprep.subr.mxu0 0.0
        %950 = vmatpush1.xpose.msra.mxu0 0.0
        %951 = vmatprep.subr.mxu0 0.0
        %952 = vmatpush1.xpose.msra.mxu0 0.0
        %953 = vmatprep.subr.mxu0 0.0
        %954 = vmatpush1.xpose.msra.mxu0 0.0
        %955 = vmatprep.subr.mxu0 0.0
        %956 = vmatpush1.xpose.msra.mxu0 0.0
        %957 = vmatprep.subr.mxu0 0.0
        %958 = vmatpush1.xpose.msra.mxu0 0.0
        %959 = vmatprep.mubr.f32.mxu0 0.0
        %960 = vmatmul.mubr.f32.gmra.mrb[0].mxu0 %v891
        %v961 = vpop.f32.mrb[0].mxu0
        %v962 = vadd.f32 0.0, %v961
        %v963 = vpop.f32.mrb[0].mxu0
        %964 = vdwg.mxu0
        %v965 = vsel %vm560, %v962, -inf
        %966 = vmax.xlane.f32.xlu0 %v965
        %v967 = vpop.xlane.xlu0 %966
        %v968 = vsub.f32 %v962, %v967
        %v969 = vmul.f32 %v968, 1.442695
        %v970 = vpow.pop %v969
        %v971 = vsel %vm560, %v970, 0.0
        %972 = vadd.xlane.f32.xlu0 %v971
        %v973 = vpop.xlane.xlu0 %972
        %v974 = vrcp.pop %v973
        %v975 = vmul.f32 %v970, %v974
        %976 = vrot.lane.b32.xlu0 %v554, 48
        %v977 = vpop.permute.xlu0 %976
        %v980 = vsel %vm560, %v975, 0
        %982 = vmatprep.subr.mxu0 0.0
        %983 = vmatpush1.msra.mxu0 %v977
        %984 = vmatprep.subr.mxu0 0.0
        %985 = vmatpush1.msra.mxu0 0.0
        %986 = vmatprep.subr.mxu0 0.0
        %987 = vmatpush1.msra.mxu0 0.0
        %988 = vmatprep.subr.mxu0 0.0
        %989 = vmatpush1.msra.mxu0 0.0
        %990 = vmatprep.subr.mxu0 0.0
        %991 = vmatpush1.msra.mxu0 0.0
        %992 = vmatprep.subr.mxu0 0.0
        %993 = vmatpush1.msra.mxu0 0.0
        %994 = vmatprep.subr.mxu0 0.0
        %995 = vmatpush1.msra.mxu0 0.0
        %996 = vmatprep.subr.mxu0 0.0
        %997 = vmatpush1.msra.mxu0 0.0
        %998 = vmatprep.subr.mxu0 0.0
        %999 = vmatpush1.msra.mxu0 0.0
        %1000 = vmatprep.subr.mxu0 0.0
        %1001 = vmatpush1.msra.mxu0 0.0
        %1002 = vmatprep.subr.mxu0 0.0
        %1003 = vmatpush1.msra.mxu0 0.0
        %1004 = vmatprep.subr.mxu0 0.0
        %1005 = vmatpush1.msra.mxu0 0.0
        %1006 = vmatprep.subr.mxu0 0.0
        %1007 = vmatpush1.msra.mxu0 0.0
        %1008 = vmatprep.subr.mxu0 0.0
        %1009 = vmatpush1.msra.mxu0 0.0
        %1010 = vmatprep.subr.mxu0 0.0
        %1011 = vmatpush1.msra.mxu0 0.0
        %1012 = vmatprep.subr.mxu0 0.0
        %1013 = vmatpush1.msra.mxu0 0.0
        %1014 = vmatprep.subr.mxu0 0.0
        %1015 = vmatpush1.msra.mxu0 0.0
        %1016 = vmatprep.subr.mxu0 0.0
        %1017 = vmatpush1.msra.mxu0 0.0
        %1018 = vmatprep.subr.mxu0 0.0
        %1019 = vmatpush1.msra.mxu0 0.0
        %1020 = vmatprep.subr.mxu0 0.0
        %1021 = vmatpush1.msra.mxu0 0.0
        %1022 = vmatprep.subr.mxu0 0.0
        %1023 = vmatpush1.msra.mxu0 0.0
        %1024 = vmatprep.subr.mxu0 0.0
        %1025 = vmatpush1.msra.mxu0 0.0
        %1026 = vmatprep.subr.mxu0 0.0
        %1027 = vmatpush1.msra.mxu0 0.0
        %1028 = vmatprep.subr.mxu0 0.0
        %1029 = vmatpush1.msra.mxu0 0.0
        %1030 = vmatprep.subr.mxu0 0.0
        %1031 = vmatpush1.msra.mxu0 0.0
        %1032 = vmatprep.subr.mxu0 0.0
        %1033 = vmatpush1.msra.mxu0 0.0
        %1034 = vmatprep.subr.mxu0 0.0
        %1035 = vmatpush1.msra.mxu0 0.0
        %1036 = vmatprep.subr.mxu0 0.0
        %1037 = vmatpush1.msra.mxu0 0.0
        %1038 = vmatprep.subr.mxu0 0.0
        %1039 = vmatpush1.msra.mxu0 0.0
        %1040 = vmatprep.subr.mxu0 0.0
        %1041 = vmatpush1.msra.mxu0 0.0
        %1042 = vmatprep.subr.mxu0 0.0
        %1043 = vmatpush1.msra.mxu0 0.0
        %1044 = vmatprep.subr.mxu0 0.0
        %1045 = vmatpush1.msra.mxu0 0.0
        %1046 = vmatprep.mubr.f32.mxu0 0.0
        %1047 = vmatmul.mubr.f32.gmra.mrb[0].mxu0 %v980
        %v1048 = vpop.f32.mrb[0].mxu0
        %v1049 = vadd.f32 0.0, %v1048
        %v1050 = vpop.f32.mrb[0].mxu0
        %1051 = vdwg.mxu0
        %1052 = vrot.lane.b32.xlu0 %v554, 104
        %v1053 = vpop.permute.xlu0 %1052
        %1054 = vrot.lane.b32.xlu0 %v554, 72
        %v1055 = vpop.permute.xlu0 %1054
        %v1056 = vsel %vm560, %v1053, 0
        %v1058 = vsel %vm560, %v1055, 0
        %1060 = vmatprep.subr.mxu0 0.0
        %1061 = vmatpush1.xpose.msra.mxu0 %v1058
        %1062 = vmatprep.subr.mxu0 0.0
        %1063 = vmatpush1.xpose.msra.mxu0 0.0
        %1064 = vmatprep.subr.mxu0 0.0
        %1065 = vmatpush1.xpose.msra.mxu0 0.0
        %1066 = vmatprep.subr.mxu0 0.0
        %1067 = vmatpush1.xpose.msra.mxu0 0.0
        %1068 = vmatprep.subr.mxu0 0.0
        %1069 = vmatpush1.xpose.msra.mxu0 0.0
        %1070 = vmatprep.subr.mxu0 0.0
        %1071 = vmatpush1.xpose.msra.mxu0 0.0
        %1072 = vmatprep.subr.mxu0 0.0
        %1073 = vmatpush1.xpose.msra.mxu0 0.0
        %1074 = vmatprep.subr.mxu0 0.0
        %1075 = vmatpush1.xpose.msra.mxu0 0.0
        %1076 = vmatprep.subr.mxu0 0.0
        %1077 = vmatpush1.xpose.msra.mxu0 0.0
        %1078 = vmatprep.subr.mxu0 0.0
        %1079 = vmatpush1.xpose.msra.mxu0 0.0
        %1080 = vmatprep.subr.mxu0 0.0
        %1081 = vmatpush1.xpose.msra.mxu0 0.0
        %1082 = vmatprep.subr.mxu0 0.0
        %1083 = vmatpush1.xpose.msra.mxu0 0.0
        %1084 = vmatprep.subr.mxu0 0.0
        %1085 = vmatpush1.xpose.msra.mxu0 0.0
        %1086 = vmatprep.subr.mxu0 0.0
        %1087 = vmatpush1.xpose.msra.mxu0 0.0
        %1088 = vmatprep.subr.mxu0 0.0
        %1089 = vmatpush1.xpose.msra.mxu0 0.0
        %1090 = vmatprep.subr.mxu0 0.0
        %1091 = vmatpush1.xpose.msra.mxu0 0.0
        %1092 = vmatprep.subr.mxu0 0.0
        %1093 = vmatpush1.xpose.msra.mxu0 0.0
        %1094 = vmatprep.subr.mxu0 0.0
        %1095 = vmatpush1.xpose.msra.mxu0 0.0
        %1096 = vmatprep.subr.mxu0 0.0
        %1097 = vmatpush1.xpose.msra.mxu0 0.0
        %1098 = vmatprep.subr.mxu0 0.0
        %1099 = vmatpush1.xpose.msra.mxu0 0.0
        %1100 = vmatprep.subr.mxu0 0.0
        %1101 = vmatpush1.xpose.msra.mxu0 0.0
        %1102 = vmatprep.subr.mxu0 0.0
        %1103 = vmatpush1.xpose.msra.mxu0 0.0
        %1104 = vmatprep.subr.mxu0 0.0
        %1105 = vmatpush1.xpose.msra.mxu0 0.0
        %1106 = vmatprep.subr.mxu0 0.0
        %1107 = vmatpush1.xpose.msra.mxu0 0.0
        %1108 = vmatprep.subr.mxu0 0.0
        %1109 = vmatpush1.xpose.msra.mxu0 0.0
        %1110 = vmatprep.subr.mxu0 0.0
        %1111 = vmatpush1.xpose.msra.mxu0 0.0
        %1112 = vmatprep.subr.mxu0 0.0
        %1113 = vmatpush1.xpose.msra.mxu0 0.0
        %1114 = vmatprep.subr.mxu0 0.0
        %1115 = vmatpush1.xpose.msra.mxu0 0.0
        %1116 = vmatprep.subr.mxu0 0.0
        %1117 = vmatpush1.xpose.msra.mxu0 0.0
        %1118 = vmatprep.subr.mxu0 0.0
        %1119 = vmatpush1.xpose.msra.mxu0 0.0
        %1120 = vmatprep.subr.mxu0 0.0
        %1121 = vmatpush1.xpose.msra.mxu0 0.0
        %1122 = vmatprep.subr.mxu0 0.0
        %1123 = vmatpush1.xpose.msra.mxu0 0.0
        %1124 = vmatprep.mubr.f32.mxu0 0.0
        %1125 = vmatmul.mubr.f32.gmra.mrb[0].mxu0 %v1056
        %v1126 = vpop.f32.mrb[0].mxu0
        %v1127 = vadd.f32 0.0, %v1126
        %v1128 = vpop.f32.mrb[0].mxu0
        %1129 = vdwg.mxu0
        %v1130 = vsel %vm560, %v1127, -inf
        %1131 = vmax.xlane.f32.xlu0 %v1130
        %v1132 = vpop.xlane.xlu0 %1131
        %v1133 = vsub.f32 %v1127, %v1132
        %v1134 = vmul.f32 %v1133, 1.442695
        %v1135 = vpow.pop %v1134
        %v1136 = vsel %vm560, %v1135, 0.0
        %1137 = vadd.xlane.f32.xlu0 %v1136
        %v1138 = vpop.xlane.xlu0 %1137
        %v1139 = vrcp.pop %v1138
        %v1140 = vmul.f32 %v1135, %v1139
        %1141 = vrot.lane.b32.xlu0 %v554, 40
        %v1142 = vpop.permute.xlu0 %1141
        %v1145 = vsel %vm560, %v1140, 0
        %1147 = vmatprep.subr.mxu0 0.0
        %1148 = vmatpush1.msra.mxu0 %v1142
        %1149 = vmatprep.subr.mxu0 0.0
        %1150 = vmatpush1.msra.mxu0 0.0
        %1151 = vmatprep.subr.mxu0 0.0
        %1152 = vmatpush1.msra.mxu0 0.0
        %1153 = vmatprep.subr.mxu0 0.0
        %1154 = vmatpush1.msra.mxu0 0.0
        %1155 = vmatprep.subr.mxu0 0.0
        %1156 = vmatpush1.msra.mxu0 0.0
        %1157 = vmatprep.subr.mxu0 0.0
        %1158 = vmatpush1.msra.mxu0 0.0
        %1159 = vmatprep.subr.mxu0 0.0
        %1160 = vmatpush1.msra.mxu0 0.0
        %1161 = vmatprep.subr.mxu0 0.0
        %1162 = vmatpush1.msra.mxu0 0.0
        %1163 = vmatprep.subr.mxu0 0.0
        %1164 = vmatpush1.msra.mxu0 0.0
        %1165 = vmatprep.subr.mxu0 0.0
        %1166 = vmatpush1.msra.mxu0 0.0
        %1167 = vmatprep.subr.mxu0 0.0
        %1168 = vmatpush1.msra.mxu0 0.0
        %1169 = vmatprep.subr.mxu0 0.0
        %1170 = vmatpush1.msra.mxu0 0.0
        %1171 = vmatprep.subr.mxu0 0.0
        %1172 = vmatpush1.msra.mxu0 0.0
        %1173 = vmatprep.subr.mxu0 0.0
        %1174 = vmatpush1.msra.mxu0 0.0
        %1175 = vmatprep.subr.mxu0 0.0
        %1176 = vmatpush1.msra.mxu0 0.0
        %1177 = vmatprep.subr.mxu0 0.0
        %1178 = vmatpush1.msra.mxu0 0.0
        %1179 = vmatprep.subr.mxu0 0.0
        %1180 = vmatpush1.msra.mxu0 0.0
        %1181 = vmatprep.subr.mxu0 0.0
        %1182 = vmatpush1.msra.mxu0 0.0
        %1183 = vmatprep.subr.mxu0 0.0
        %1184 = vmatpush1.msra.mxu0 0.0
        %1185 = vmatprep.subr.mxu0 0.0
        %1186 = vmatpush1.msra.mxu0 0.0
        %1187 = vmatprep.subr.mxu0 0.0
        %1188 = vmatpush1.msra.mxu0 0.0
        %1189 = vmatprep.subr.mxu0 0.0
        %1190 = vmatpush1.msra.mxu0 0.0
        %1191 = vmatprep.subr.mxu0 0.0
        %1192 = vmatpush1.msra.mxu0 0.0
        %1193 = vmatprep.subr.mxu0 0.0
        %1194 = vmatpush1.msra.mxu0 0.0
        %1195 = vmatprep.subr.mxu0 0.0
        %1196 = vmatpush1.msra.mxu0 0.0
        %1197 = vmatprep.subr.mxu0 0.0
        %1198 = vmatpush1.msra.mxu0 0.0
        %1199 = vmatprep.subr.mxu0 0.0
        %1200 = vmatpush1.msra.mxu0 0.0
        %1201 = vmatprep.subr.mxu0 0.0
        %1202 = vmatpush1.msra.mxu0 0.0
        %1203 = vmatprep.subr.mxu0 0.0
        %1204 = vmatpush1.msra.mxu0 0.0
        %1205 = vmatprep.subr.mxu0 0.0
        %1206 = vmatpush1.msra.mxu0 0.0
        %1207 = vmatprep.subr.mxu0 0.0
        %1208 = vmatpush1.msra.mxu0 0.0
        %1209 = vmatprep.subr.mxu0 0.0
        %1210 = vmatpush1.msra.mxu0 0.0
        %1211 = vmatprep.mubr.f32.mxu0 0.0
        %1212 = vmatmul.mubr.f32.gmra.mrb[0].mxu0 %v1145
        %v1213 = vpop.f32.mrb[0].mxu0
        %v1214 = vadd.f32 0.0, %v1213
        %v1215 = vpop.f32.mrb[0].mxu0
        %1216 = vdwg.mxu0
        %1218 = vrot.lane.b32.xlu0 %v884, 8
        %v1219 = vpop.permute.xlu0 %1218
        %1222 = vrot.lane.b32.xlu0 %v1049, 16
        %v1223 = vpop.permute.xlu0 %1222
        %1226 = vrot.lane.b32.xlu0 %v1214, 24
        %v1227 = vpop.permute.xlu0 %1226
        %v1229 = vsel %vm560, %v719, %v1219
        %vm1230 = vcmask 130048
        %v1231 = vsel %vm1230, %v1229, %v1223
        %vm1232 = vcmask 195584
        %v1233 = vsel %vm1232, %v1231, %v1227
        %v1234 = vld [vmem:[#allocation7] sm:$0xff]
        %v1235 = vld [vmem:[#allocation7 + $0x8] sm:$0xff]
        %v1236 = vld [vmem:[#allocation7 + $0x10] sm:$0xff]
        %v1237 = vld [vmem:[#allocation7 + $0x18] sm:$0xff]
        %v1238 = vlaneseq
        %v1239 = vshrl.u32 %v1238, 7
        %v1240 = vsub.s32 1, %v1239
        %v1241 = vrot.slane %v388, %v1240
        %v1243 = vsel %vm399, %v1233, 0
        %1245 = vmatprep.subr.mxu0 0.0
        %1246 = vmatpush1.msra.mxu0 %v1234
        %1247 = vmatprep.subr.mxu0 0.0
        %1248 = vmatpush1.msra.mxu0 %v1235
        %1249 = vmatprep.subr.mxu0 0.0
        %1250 = vmatpush1.msra.mxu0 %v1236
        %1251 = vmatprep.subr.mxu0 0.0
        %1252 = vmatpush1.msra.mxu0 %v1237
        %1253 = vmatprep.subr.mxu0 0.0
        %1254 = vmatpush1.msra.mxu0 0.0
        %1255 = vmatprep.subr.mxu0 0.0
        %1256 = vmatpush1.msra.mxu0 0.0
        %1257 = vmatprep.subr.mxu0 0.0
        %1258 = vmatpush1.msra.mxu0 0.0
        %1259 = vmatprep.subr.mxu0 0.0
        %1260 = vmatpush1.msra.mxu0 0.0
        %1261 = vmatprep.subr.mxu0 0.0
        %1262 = vmatpush1.msra.mxu0 0.0
        %1263 = vmatprep.subr.mxu0 0.0
        %1264 = vmatpush1.msra.mxu0 0.0
        %1265 = vmatprep.subr.mxu0 0.0
        %1266 = vmatpush1.msra.mxu0 0.0
        %1267 = vmatprep.subr.mxu0 0.0
        %1268 = vmatpush1.msra.mxu0 0.0
        %1269 = vmatprep.subr.mxu0 0.0
        %1270 = vmatpush1.msra.mxu0 0.0
        %1271 = vmatprep.subr.mxu0 0.0
        %1272 = vmatpush1.msra.mxu0 0.0
        %1273 = vmatprep.subr.mxu0 0.0
        %1274 = vmatpush1.msra.mxu0 0.0
        %1275 = vmatprep.subr.mxu0 0.0
        %1276 = vmatpush1.msra.mxu0 0.0
        %1277 = vmatprep.subr.mxu0 0.0
        %1278 = vmatpush1.msra.mxu0 0.0
        %1279 = vmatprep.subr.mxu0 0.0
        %1280 = vmatpush1.msra.mxu0 0.0
        %1281 = vmatprep.subr.mxu0 0.0
        %1282 = vmatpush1.msra.mxu0 0.0
        %1283 = vmatprep.subr.mxu0 0.0
        %1284 = vmatpush1.msra.mxu0 0.0
        %1285 = vmatprep.subr.mxu0 0.0
        %1286 = vmatpush1.msra.mxu0 0.0
        %1287 = vmatprep.subr.mxu0 0.0
        %1288 = vmatpush1.msra.mxu0 0.0
        %1289 = vmatprep.subr.mxu0 0.0
        %1290 = vmatpush1.msra.mxu0 0.0
        %1291 = vmatprep.subr.mxu0 0.0
        %1292 = vmatpush1.msra.mxu0 0.0
        %1293 = vmatprep.subr.mxu0 0.0
        %1294 = vmatpush1.msra.mxu0 0.0
        %1295 = vmatprep.subr.mxu0 0.0
        %1296 = vmatpush1.msra.mxu0 0.0
        %1297 = vmatprep.subr.mxu0 0.0
        %1298 = vmatpush1.msra.mxu0 0.0
        %1299 = vmatprep.subr.mxu0 0.0
        %1300 = vmatpush1.msra.mxu0 0.0
        %1301 = vmatprep.subr.mxu0 0.0
        %1302 = vmatpush1.msra.mxu0 0.0
        %1303 = vmatprep.subr.mxu0 0.0
        %1304 = vmatpush1.msra.mxu0 0.0
        %1305 = vmatprep.subr.mxu0 0.0
        %1306 = vmatpush1.msra.mxu0 0.0
        %1307 = vmatprep.subr.mxu0 0.0
        %1308 = vmatpush1.msra.mxu0 0.0
        %1309 = vmatprep.mubr.f32.mxu0 0.0
        %1310 = vmatmul.mubr.f32.gmra.mrb[0].mxu0 %v1243
        %v1311 = vpop.f32.mrb[0].mxu0
        %v1312 = vadd.f32 %v1241, %v1311
        %v1313 = vpop.f32.mrb[0].mxu0
        %1314 = vdwg.mxu0
        %v1315 = vadd.f32 %v470, %v1312
        %v1316 = vsel %vm399, %v1315, 0.0
        %1317 = vadd.xlane.f32.xlu0 %v1316
        %v1318 = vpop.xlane.xlu0 %1317
        %v1319 = vrcp.pop 32.0
        %v1320 = vmul.f32 %v1318, %v1319
        %v1321 = vsub.f32 %v1315, %v1320
        %v1322 = vmul.f32 %v1321, %v1321
        %v1323 = vsel %vm399, %v1322, 0.0
        %1324 = vadd.xlane.f32.xlu0 %v1323
        %v1325 = vpop.xlane.xlu0 %1324
        %v1326 = vmul.f32 %v1325, %v1319
        %v1327 = vadd.f32 %v1326, 1e-05
        %v1328 = vrsqrt.pop %v1327
        %v1329 = vmul.f32 %v1321, %v1328
        %v1330 = vlaneseq
        %v1331 = vshrl.u32 %v1330, 7
        %v1332 = vsub.s32 2, %v1331
        %v1333 = vrot.slane %v388, %v1332
        %v1334 = vmul.f32 %v1329, %v1333
        %v1335 = vlaneseq
        %v1336 = vshrl.u32 %v1335, 7
        %v1337 = vsub.s32 3, %v1336
        %v1338 = vrot.slane %v388, %v1337
        %v1339 = vadd.f32 %v1334, %v1338
        %s1340 = scalar_lea.vmem [#allocation7], 32
        %v1341 = vld [vmem:[%s1340] sm:$0xff]
        %v1342 = vld [vmem:[%s1340 + $0x8] sm:$0xff]
        %v1343 = vld [vmem:[%s1340 + $0x10] sm:$0xff]
        %v1344 = vld [vmem:[%s1340 + $0x18] sm:$0xff]
        %v1345 = vlaneseq
        %v1346 = vshrl.u32 %v1345, 7
        %v1347 = vsub.s32 4, %v1346
        %v1348 = vrot.slane %v388, %v1347
        %v1350 = vsel %vm399, %v1339, 0
        %1352 = vmatprep.subr.mxu0 0.0
        %1353 = vmatpush1.msra.mxu0 %v1341
        %1354 = vmatprep.subr.mxu0 0.0
        %1355 = vmatpush1.msra.mxu0 %v1342
        %1356 = vmatprep.subr.mxu0 0.0
        %1357 = vmatpush1.msra.mxu0 %v1343
        %1358 = vmatprep.subr.mxu0 0.0
        %1359 = vmatpush1.msra.mxu0 %v1344
        %1360 = vmatprep.subr.mxu0 0.0
        %1361 = vmatpush1.msra.mxu0 0.0
        %1362 = vmatprep.subr.mxu0 0.0
        %1363 = vmatpush1.msra.mxu0 0.0
        %1364 = vmatprep.subr.mxu0 0.0
        %1365 = vmatpush1.msra.mxu0 0.0
        %1366 = vmatprep.subr.mxu0 0.0
        %1367 = vmatpush1.msra.mxu0 0.0
        %1368 = vmatprep.subr.mxu0 0.0
        %1369 = vmatpush1.msra.mxu0 0.0
        %1370 = vmatprep.subr.mxu0 0.0
        %1371 = vmatpush1.msra.mxu0 0.0
        %1372 = vmatprep.subr.mxu0 0.0
        %1373 = vmatpush1.msra.mxu0 0.0
        %1374 = vmatprep.subr.mxu0 0.0
        %1375 = vmatpush1.msra.mxu0 0.0
        %1376 = vmatprep.subr.mxu0 0.0
        %1377 = vmatpush1.msra.mxu0 0.0
        %1378 = vmatprep.subr.mxu0 0.0
        %1379 = vmatpush1.msra.mxu0 0.0
        %1380 = vmatprep.subr.mxu0 0.0
        %1381 = vmatpush1.msra.mxu0 0.0
        %1382 = vmatprep.subr.mxu0 0.0
        %1383 = vmatpush1.msra.mxu0 0.0
        %1384 = vmatprep.subr.mxu0 0.0
        %1385 = vmatpush1.msra.mxu0 0.0
        %1386 = vmatprep.subr.mxu0 0.0
        %1387 = vmatpush1.msra.mxu0 0.0
        %1388 = vmatprep.subr.mxu0 0.0
        %1389 = vmatpush1.msra.mxu0 0.0
        %1390 = vmatprep.subr.mxu0 0.0
        %1391 = vmatpush1.msra.mxu0 0.0
        %1392 = vmatprep.subr.mxu0 0.0
        %1393 = vmatpush1.msra.mxu0 0.0
        %1394 = vmatprep.subr.mxu0 0.0
        %1395 = vmatpush1.msra.mxu0 0.0
        %1396 = vmatprep.subr.mxu0 0.0
        %1397 = vmatpush1.msra.mxu0 0.0
        %1398 = vmatprep.subr.mxu0 0.0
        %1399 = vmatpush1.msra.mxu0 0.0
        %1400 = vmatprep.subr.mxu0 0.0
        %1401 = vmatpush1.msra.mxu0 0.0
        %1402 = vmatprep.subr.mxu0 0.0
        %1403 = vmatpush1.msra.mxu0 0.0
        %1404 = vmatprep.subr.mxu0 0.0
        %1405 = vmatpush1.msra.mxu0 0.0
        %1406 = vmatprep.subr.mxu0 0.0
        %1407 = vmatpush1.msra.mxu0 0.0
        %1408 = vmatprep.subr.mxu0 0.0
        %1409 = vmatpush1.msra.mxu0 0.0
        %1410 = vmatprep.subr.mxu0 0.0
        %1411 = vmatpush1.msra.mxu0 0.0
        %1412 = vmatprep.subr.mxu0 0.0
        %1413 = vmatpush1.msra.mxu0 0.0
        %1414 = vmatprep.subr.mxu0 0.0
        %1415 = vmatpush1.msra.mxu0 0.0
        %1416 = vmatprep.mubr.f32.mxu0 0.0
        %1417 = vmatmul.mubr.f32.gmra.mrb[0].mxu0 %v1350
        %v1418 = vpop.f32.mrb[0].mxu0
        %v1419 = vadd.f32 %v1348, %v1418
        %v1420 = vpop.f32.mrb[0].mxu0
        %1421 = vdwg.mxu0
        %v1422 = vmax.f32 %v1419, 0.0
        %s1423 = scalar_lea.vmem [#allocation7], 64
        %v1424 = vld [vmem:[%s1423] sm:$0xff]
        %v1425 = vld [vmem:[%s1423 + $0x8] sm:$0xff]
        %v1426 = vld [vmem:[%s1423 + $0x10] sm:$0xff]
        %v1427 = vld [vmem:[%s1423 + $0x18] sm:$0xff]
        %v1428 = vlaneseq
        %v1429 = vshrl.u32 %v1428, 7
        %v1430 = vsub.s32 5, %v1429
        %v1431 = vrot.slane %v388, %v1430
        %v1433 = vsel %vm399, %v1422, 0
        %1435 = vmatprep.subr.mxu0 0.0
        %1436 = vmatpush1.msra.mxu0 %v1424
        %1437 = vmatprep.subr.mxu0 0.0
        %1438 = vmatpush1.msra.mxu0 %v1425
        %1439 = vmatprep.subr.mxu0 0.0
        %1440 = vmatpush1.msra.mxu0 %v1426
        %1441 = vmatprep.subr.mxu0 0.0
        %1442 = vmatpush1.msra.mxu0 %v1427
        %1443 = vmatprep.subr.mxu0 0.0
        %1444 = vmatpush1.msra.mxu0 0.0
        %1445 = vmatprep.subr.mxu0 0.0
        %1446 = vmatpush1.msra.mxu0 0.0
        %1447 = vmatprep.subr.mxu0 0.0
        %1448 = vmatpush1.msra.mxu0 0.0
        %1449 = vmatprep.subr.mxu0 0.0
        %1450 = vmatpush1.msra.mxu0 0.0
        %1451 = vmatprep.subr.mxu0 0.0
        %1452 = vmatpush1.msra.mxu0 0.0
        %1453 = vmatprep.subr.mxu0 0.0
        %1454 = vmatpush1.msra.mxu0 0.0
        %1455 = vmatprep.subr.mxu0 0.0
        %1456 = vmatpush1.msra.mxu0 0.0
        %1457 = vmatprep.subr.mxu0 0.0
        %1458 = vmatpush1.msra.mxu0 0.0
        %1459 = vmatprep.subr.mxu0 0.0
        %1460 = vmatpush1.msra.mxu0 0.0
        %1461 = vmatprep.subr.mxu0 0.0
        %1462 = vmatpush1.msra.mxu0 0.0
        %1463 = vmatprep.subr.mxu0 0.0
        %1464 = vmatpush1.msra.mxu0 0.0
        %1465 = vmatprep.subr.mxu0 0.0
        %1466 = vmatpush1.msra.mxu0 0.0
        %1467 = vmatprep.subr.mxu0 0.0
        %1468 = vmatpush1.msra.mxu0 0.0
        %1469 = vmatprep.subr.mxu0 0.0
        %1470 = vmatpush1.msra.mxu0 0.0
        %1471 = vmatprep.subr.mxu0 0.0
        %1472 = vmatpush1.msra.mxu0 0.0
        %1473 = vmatprep.subr.mxu0 0.0
        %1474 = vmatpush1.msra.mxu0 0.0
        %1475 = vmatprep.subr.mxu0 0.0
        %1476 = vmatpush1.msra.mxu0 0.0
        %1477 = vmatprep.subr.mxu0 0.0
        %1478 = vmatpush1.msra.mxu0 0.0
        %1479 = vmatprep.subr.mxu0 0.0
        %1480 = vmatpush1.msra.mxu0 0.0
        %1481 = vmatprep.subr.mxu0 0.0
        %1482 = vmatpush1.msra.mxu0 0.0
        %1483 = vmatprep.subr.mxu0 0.0
        %1484 = vmatpush1.msra.mxu0 0.0
        %1485 = vmatprep.subr.mxu0 0.0
        %1486 = vmatpush1.msra.mxu0 0.0
        %1487 = vmatprep.subr.mxu0 0.0
        %1488 = vmatpush1.msra.mxu0 0.0
        %1489 = vmatprep.subr.mxu0 0.0
        %1490 = vmatpush1.msra.mxu0 0.0
        %1491 = vmatprep.subr.mxu0 0.0
        %1492 = vmatpush1.msra.mxu0 0.0
        %1493 = vmatprep.subr.mxu0 0.0
        %1494 = vmatpush1.msra.mxu0 0.0
        %1495 = vmatprep.subr.mxu0 0.0
        %1496 = vmatpush1.msra.mxu0 0.0
        %1497 = vmatprep.subr.mxu0 0.0
        %1498 = vmatpush1.msra.mxu0 0.0
        %1499 = vmatprep.mubr.f32.mxu0 0.0
        %1500 = vmatmul.mubr.f32.gmra.mrb[0].mxu0 %v1433
        %v1501 = vpop.f32.mrb[0].mxu0
        %v1502 = vadd.f32 %v1431, %v1501
        %v1503 = vpop.f32.mrb[0].mxu0
        %1504 = vdwg.mxu0
        %v1505 = vadd.f32 %v1339, %v1502
        %v1506 = vsel %vm399, %v1505, 0.0
        %1507 = vadd.xlane.f32.xlu0 %v1506
        %v1508 = vpop.xlane.xlu0 %1507
        %v1509 = vmul.f32 %v1508, %v1319
        %v1510 = vsub.f32 %v1505, %v1509
        %v1511 = vmul.f32 %v1510, %v1510
        %v1512 = vsel %vm399, %v1511, 0.0
        %1513 = vadd.xlane.f32.xlu0 %v1512
        %v1514 = vpop.xlane.xlu0 %1513
        %v1515 = vmul.f32 %v1514, %v1319
        %v1516 = vadd.f32 %v1515, 1e-05
        %v1517 = vrsqrt.pop %v1516
        %v1518 = vmul.f32 %v1510, %v1517
        %v1519 = vlaneseq
        %v1520 = vshrl.u32 %v1519, 7
        %v1521 = vsub.s32 6, %v1520
        %v1522 = vrot.slane %v388, %v1521
        %v1523 = vmul.f32 %v1518, %v1522
        %v1524 = vlaneseq
        %v1525 = vshrl.u32 %v1524, 7
        %v1526 = vsub.s32 7, %v1525
        %v1527 = vrot.slane %v388, %v1526
        %v1528 = vadd.f32 %v1523, %v1527
        %s1529 = scalar_lea.vmem [#allocation7], 96
        %v1530 = vld [vmem:[%s1529] sm:$0xff]
        %v1531 = vld [vmem:[%s1529 + $0x8] sm:$0xff]
        %v1532 = vld [vmem:[%s1529 + $0x10] sm:$0xff]
        %v1533 = vld [vmem:[%s1529 + $0x18] sm:$0xff]
        %v1534 = vlaneseq
        %v1535 = vshrl.u32 %v1534, 7
        %v1536 = vsub.s32 0, %v1535
        %v1537 = vrot.slane %v389, %v1536
        %v1539 = vsel %vm399, %v1528, 0
        %1541 = vmatprep.subr.mxu0 0.0
        %1542 = vmatpush1.msra.mxu0 %v1530
        %1543 = vmatprep.subr.mxu0 0.0
        %1544 = vmatpush1.msra.mxu0 %v1531
        %1545 = vmatprep.subr.mxu0 0.0
        %1546 = vmatpush1.msra.mxu0 %v1532
        %1547 = vmatprep.subr.mxu0 0.0
        %1548 = vmatpush1.msra.mxu0 %v1533
        %1549 = vmatprep.subr.mxu0 0.0
        %1550 = vmatpush1.msra.mxu0 0.0
        %1551 = vmatprep.subr.mxu0 0.0
        %1552 = vmatpush1.msra.mxu0 0.0
        %1553 = vmatprep.subr.mxu0 0.0
        %1554 = vmatpush1.msra.mxu0 0.0
        %1555 = vmatprep.subr.mxu0 0.0
        %1556 = vmatpush1.msra.mxu0 0.0
        %1557 = vmatprep.subr.mxu0 0.0
        %1558 = vmatpush1.msra.mxu0 0.0
        %1559 = vmatprep.subr.mxu0 0.0
        %1560 = vmatpush1.msra.mxu0 0.0
        %1561 = vmatprep.subr.mxu0 0.0
        %1562 = vmatpush1.msra.mxu0 0.0
        %1563 = vmatprep.subr.mxu0 0.0
        %1564 = vmatpush1.msra.mxu0 0.0
        %1565 = vmatprep.subr.mxu0 0.0
        %1566 = vmatpush1.msra.mxu0 0.0
        %1567 = vmatprep.subr.mxu0 0.0
        %1568 = vmatpush1.msra.mxu0 0.0
        %1569 = vmatprep.subr.mxu0 0.0
        %1570 = vmatpush1.msra.mxu0 0.0
        %1571 = vmatprep.subr.mxu0 0.0
        %1572 = vmatpush1.msra.mxu0 0.0
        %1573 = vmatprep.subr.mxu0 0.0
        %1574 = vmatpush1.msra.mxu0 0.0
        %1575 = vmatprep.subr.mxu0 0.0
        %1576 = vmatpush1.msra.mxu0 0.0
        %1577 = vmatprep.subr.mxu0 0.0
        %1578 = vmatpush1.msra.mxu0 0.0
        %1579 = vmatprep.subr.mxu0 0.0
        %1580 = vmatpush1.msra.mxu0 0.0
        %1581 = vmatprep.subr.mxu0 0.0
        %1582 = vmatpush1.msra.mxu0 0.0
        %1583 = vmatprep.subr.mxu0 0.0
        %1584 = vmatpush1.msra.mxu0 0.0
        %1585 = vmatprep.subr.mxu0 0.0
        %1586 = vmatpush1.msra.mxu0 0.0
        %1587 = vmatprep.subr.mxu0 0.0
        %1588 = vmatpush1.msra.mxu0 0.0
        %1589 = vmatprep.subr.mxu0 0.0
        %1590 = vmatpush1.msra.mxu0 0.0
        %1591 = vmatprep.subr.mxu0 0.0
        %1592 = vmatpush1.msra.mxu0 0.0
        %1593 = vmatprep.subr.mxu0 0.0
        %1594 = vmatpush1.msra.mxu0 0.0
        %1595 = vmatprep.subr.mxu0 0.0
        %1596 = vmatpush1.msra.mxu0 0.0
        %1597 = vmatprep.subr.mxu0 0.0
        %1598 = vmatpush1.msra.mxu0 0.0
        %1599 = vmatprep.subr.mxu0 0.0
        %1600 = vmatpush1.msra.mxu0 0.0
        %1601 = vmatprep.subr.mxu0 0.0
        %1602 = vmatpush1.msra.mxu0 0.0
        %1603 = vmatprep.subr.mxu0 0.0
        %1604 = vmatpush1.msra.mxu0 0.0
        %1605 = vmatprep.mubr.f32.mxu0 0.0
        %1606 = vmatmul.mubr.f32.gmra.mrb[0].mxu0 %v1539
        %v1607 = vpop.f32.mrb[0].mxu0
        %v1608 = vadd.f32 %v1537, %v1607
        %v1609 = vpop.f32.mrb[0].mxu0
        %1610 = vdwg.mxu0
        %v1611 = vld [vmem:[%s5] sm:$0xff]
        %v1612 = vld [vmem:[%s5 + $0x8] sm:$0xff]
        %v1613 = vld [vmem:[%s5 + $0x10] sm:$0xff]
        %v1614 = vld [vmem:[%s5 + $0x18] sm:$0xff]
        %v1615 = vld [vmem:[%s6] sm:$0x1]
        %v1617 = vlaneseq
        %v1618 = vshrl.u32 %v1617, 7
        %v1619 = vsub.s32 0, %v1618
        %v1620 = vrot.slane %v1615, %v1619
        %1622 = vmatprep.subr.mxu0 0.0
        %1623 = vmatpush1.msra.mxu0 %v1611
        %1624 = vmatprep.subr.mxu0 0.0
        %1625 = vmatpush1.msra.mxu0 %v1612
        %1626 = vmatprep.subr.mxu0 0.0
        %1627 = vmatpush1.msra.mxu0 %v1613
        %1628 = vmatprep.subr.mxu0 0.0
        %1629 = vmatpush1.msra.mxu0 %v1614
        %1630 = vmatprep.subr.mxu0 0.0
        %1631 = vmatpush1.msra.mxu0 0.0
        %1632 = vmatprep.subr.mxu0 0.0
        %1633 = vmatpush1.msra.mxu0 0.0
        %1634 = vmatprep.subr.mxu0 0.0
        %1635 = vmatpush1.msra.mxu0 0.0
        %1636 = vmatprep.subr.mxu0 0.0
        %1637 = vmatpush1.msra.mxu0 0.0
        %1638 = vmatprep.subr.mxu0 0.0
        %1639 = vmatpush1.msra.mxu0 0.0
        %1640 = vmatprep.subr.mxu0 0.0
        %1641 = vmatpush1.msra.mxu0 0.0
        %1642 = vmatprep.subr.mxu0 0.0
        %1643 = vmatpush1.msra.mxu0 0.0
        %1644 = vmatprep.subr.mxu0 0.0
        %1645 = vmatpush1.msra.mxu0 0.0
        %1646 = vmatprep.subr.mxu0 0.0
        %1647 = vmatpush1.msra.mxu0 0.0
        %1648 = vmatprep.subr.mxu0 0.0
        %1649 = vmatpush1.msra.mxu0 0.0
        %1650 = vmatprep.subr.mxu0 0.0
        %1651 = vmatpush1.msra.mxu0 0.0
        %1652 = vmatprep.subr.mxu0 0.0
        %1653 = vmatpush1.msra.mxu0 0.0
        %1654 = vmatprep.subr.mxu0 0.0
        %1655 = vmatpush1.msra.mxu0 0.0
        %1656 = vmatprep.subr.mxu0 0.0
        %1657 = vmatpush1.msra.mxu0 0.0
        %1658 = vmatprep.subr.mxu0 0.0
        %1659 = vmatpush1.msra.mxu0 0.0
        %1660 = vmatprep.subr.mxu0 0.0
        %1661 = vmatpush1.msra.mxu0 0.0
        %1662 = vmatprep.subr.mxu0 0.0
        %1663 = vmatpush1.msra.mxu0 0.0
        %1664 = vmatprep.subr.mxu0 0.0
        %1665 = vmatpush1.msra.mxu0 0.0
        %1666 = vmatprep.subr.mxu0 0.0
        %1667 = vmatpush1.msra.mxu0 0.0
        %1668 = vmatprep.subr.mxu0 0.0
        %1669 = vmatpush1.msra.mxu0 0.0
        %1670 = vmatprep.subr.mxu0 0.0
        %1671 = vmatpush1.msra.mxu0 0.0
        %1672 = vmatprep.subr.mxu0 0.0
        %1673 = vmatpush1.msra.mxu0 0.0
        %1674 = vmatprep.subr.mxu0 0.0
        %1675 = vmatpush1.msra.mxu0 0.0
        %1676 = vmatprep.subr.mxu0 0.0
        %1677 = vmatpush1.msra.mxu0 0.0
        %1678 = vmatprep.subr.mxu0 0.0
        %1679 = vmatpush1.msra.mxu0 0.0
        %1680 = vmatprep.subr.mxu0 0.0
        %1681 = vmatpush1.msra.mxu0 0.0
        %1682 = vmatprep.subr.mxu0 0.0
        %1683 = vmatpush1.msra.mxu0 0.0
        %1684 = vmatprep.subr.mxu0 0.0
        %1685 = vmatpush1.msra.mxu0 0.0
        %1686 = vmatprep.mubr.f32.mxu0 0.0
        %1687 = vmatmul.mubr.f32.gmra.mrb[0].mxu0 %v1539
        %v1688 = vpop.f32.mrb[0].mxu0
        %v1689 = vadd.f32 %v1620, %v1688
        %v1690 = vpop.f32.mrb[0].mxu0
        %1691 = vdwg.mxu0
        %1692 = vst.msk [vmem:[%s377] sm:$0xff] %vm399, %v1608
        %vm1693 = vcmask 39936
        %1694 = vst.msk [vmem:[%s387] sm:$0xff] %vm1693, %v1689
        %s1695 = sand.u32 %s209, 1
        %s1696 = scalar_lea.sflag [#allocation4], %s1695
        %s1697 = sand.u32 %s209, 1
        %s1698 = smul.addr %s1697, 8
        %s1699 = scalar_lea.vmem [#allocation8], %s1698
        %p1700 = scmp.lt.s32.totalorder %s28, 1
        %s1701 = scalar_select %p1700, %s28, 1
        %s1702 = smul.addr %s1701, 8
        %s1703 = scalar_lea.vmem %s9, %s1702
        // Predicated region
        $region65: #{tpu_custom_call.1} parent=51 // pred_check
          %p1704 = pneg %p219
        $region66: #{tpu_custom_call.1} parent=51 // pred_check_branch
          %1706 = sbr.rel (%p1704) target = $region68
        $region67: #{tpu_custom_call.1} parent=51 // pred_region
          %s1708 = ssub.s32 128, 128
          %1709 = vsyncadd %s1696, %s1708
          %s1710 = smul.addr %s28, 128
          %s1711 = scalar_lea.hbm %s8, %s1710
          %s1713 = sshll.u32 %s1699, 4
          %s1714 = int_to_ptr.vmem [resolvable:$true] %s1713
          %1716 = dma.vmem_to_hbm [thread:$0]  %s1714, 128, %s1711, %s1696
        $region68: #{tpu_custom_call.1} parent=51 // pred_fallthru
          _
        // Predicated region
        $region69: #{tpu_custom_call.1} parent=51 // pred_check
          %p1717 = pneg %p245
        $region70: #{tpu_custom_call.1} parent=51 // pred_check_branch
          %1719 = sbr.rel (%p1717) target = $region72
        $region71: #{tpu_custom_call.1} parent=51 // pred_region
          _
        $region72: #{tpu_custom_call.1} parent=51 // pred_fallthru
          _
      $region52: #{tpu_custom_call.1} parent=5 // pred_fallthru
        _
      %p1720 = scmp.le.s32.totalorder 2, %s23
      // Predicated region
      $region73: #{tpu_custom_call.1} parent=5 // pred_check
        %p1721 = pneg %p1720
      $region74: #{tpu_custom_call.1} parent=5 // pred_check_branch
        %1723 = sbr.rel (%p1721) target = $region76
      $region75: #{tpu_custom_call.1} parent=5 // pred_region
        %s1724 = ssub.s32 %s23, 2
        // Predicated region
        $region77: #{tpu_custom_call.1} parent=75 // pred_check
          %p1725 = pneg %p225
        $region78: #{tpu_custom_call.1} parent=75 // pred_check_branch
          %1727 = sbr.rel (%p1725) target = $region80
        $region79: #{tpu_custom_call.1} parent=75 // pred_region
          %s1728 = sand.u32 %s210, 1
          %s1729 = scalar_lea.sflag [#allocation4], %s1728
          %s1730 = sand.u32 %s210, 1
          %s1731 = smul.addr %s1730, 8
          %s1732 = scalar_lea.vmem [#allocation8], %s1731
          %1733 = dma.done %s1729, 128
        $region80: #{tpu_custom_call.1} parent=75 // pred_fallthru
          _
        // Predicated region
        $region81: #{tpu_custom_call.1} parent=75 // pred_check
          %p1734 = pneg %p251
        $region82: #{tpu_custom_call.1} parent=75 // pred_check_branch
          %1736 = sbr.rel (%p1734) target = $region84
        $region83: #{tpu_custom_call.1} parent=75 // pred_region
          %p1737 = scmp.lt.s32.totalorder %s29, 1
          %s1738 = scalar_select %p1737, %s29, 1
          %s1739 = smul.addr %s1738, 8
          %s1740 = scalar_lea.vmem %s9, %s1739
        $region84: #{tpu_custom_call.1} parent=75 // pred_fallthru
          _
      $region76: #{tpu_custom_call.1} parent=5 // pred_fallthru
        _
    $region6: #{tpu_custom_call.1} parent=1 // loop_footer
      %s27 = sadd.s32 1, %s23
    $region7: #{tpu_custom_call.1} parent=1 // loop_footer_branch
      %22 = sbr.rel target = $region3
    $region8: #{tpu_custom_call.1} parent=1 // loop_exit
      _
    %1741 = vsyncpa [#allocation3], 1
    %s1742 = scalar_lea.sflag [#allocation3], 1
    %1743 = vsyncpa %s1742, 1
    %1744 = vsyncpa [#allocation6], 1
    %1745 = vsyncpa [#allocation4], 1
    %s1746 = scalar_lea.sflag [#allocation4], 1
    %1747 = vsyncpa %s1746, 1

</llo_original>
